<compile_context>
chip_gen: v7x
topology: tpu7x:2x2x1
jax: 0.10.0
libtpu: 0.0.40
codegen_flags: <defaults>
</compile_context>

<pallas_src>
import functools

import numpy as np
import jax
import jax.numpy as jnp
from jax.experimental import pallas as pl
from jax.experimental.pallas import tpu as pltpu


def _attention_kernel(xq_ref, xc_ref, wq_ref, wk_ref, wv_ref, wo_ref, bo_ref, o_ref,
                      k_sc, v_sc, *, heads, dim_head, scale, op_dtype):
    # xq_ref: (tq, dim)   query rows for this (batch, q-tile) grid step
    # xc_ref: (nk, dim)   full context rows for this batch element
    # wo_ref: (heads, dim_head, dim) ; bo_ref: (1, dim)
    # k_sc/v_sc: (heads, nk, dim_head) VMEM scratch, cached across q tiles of a batch.

    def split_heads(t):
        # (rows, heads*dim_head) -> (heads, rows, dim_head); one relayout per tensor.
        rows = t.shape[0]
        return t.reshape(rows, heads, dim_head).transpose(1, 0, 2)

    # ---- K/V projection + head split: once per batch element (q-tile axis "arbitrary").
    @pl.when(pl.program_id(1) == 0)
    def _():
        xc = xc_ref[...].astype(op_dtype)
        k = jnp.dot(xc, wk_ref[...], preferred_element_type=jnp.float32)   # (nk, inner)
        v = jnp.dot(xc, wv_ref[...], preferred_element_type=jnp.float32)   # (nk, inner)
        k_sc[...] = split_heads(k).astype(op_dtype)                        # (h, nk, d)
        v_sc[...] = split_heads(v).astype(op_dtype)                        # (h, nk, d)

    # ---- Q projection for this tile, softmax scale folded in once.
    xq = xq_ref[...].astype(op_dtype)
    q = jnp.dot(xq, wq_ref[...], preferred_element_type=jnp.float32)       # (tq, inner)
    q = q * scale
    q3 = split_heads(q).astype(op_dtype)                                    # (h, tq, d)

    k3 = k_sc[...]                                                           # (h, nk, d)
    v3 = v_sc[...]

    # ---- attention for all heads at once.
    dots = jnp.einsum('hqd,hkd->hqk', q3, k3,
                      preferred_element_type=jnp.float32)                    # (h, tq, nk)
    dots = dots - jnp.max(dots, axis=-1, keepdims=True)                      # stable softmax
    p = jnp.exp(dots)                                                        # f32, p <= 1
    denom = jnp.sum(p, axis=-1, keepdims=True)                               # (h, tq, 1)
    out3 = jnp.einsum('hqk,hkd->hqd', p.astype(op_dtype), v3,
                      preferred_element_type=jnp.float32)                    # (h, tq, d)
    # Deferred normalization: h*tq*d multiplies instead of h*tq*nk; exact reciprocal.
    out3 = out3 * (1.0 / denom)

    # ---- fused output projection: batched per-head matmul then reduce over heads.
    y = jnp.einsum('hqd,hdo->hqo', out3.astype(op_dtype), wo_ref[...],
                   preferred_element_type=jnp.float32)                       # (h, tq, dim)
    y = jnp.sum(y, axis=0) + bo_ref[...]                                     # (tq, dim)

    o_ref[...] = y.astype(o_ref.dtype)


def _round_up(x, m):
    return ((x + m - 1) // m) * m


def _pick_q_tile(n, cap):
    """Query tile: multiple of 8, at most `cap`; n is padded up to a multiple of it."""
    return min(_round_up(max(n, 8), 8), cap)


def _vmem_limit_bytes(default=48 * 1024 * 1024):
    """Generation-conditional VMEM limit: ~3/4 of physical (48 MiB v7x, ~96 MiB v5e/v6e)."""
    try:
        info = pltpu.get_tpu_info()
        cap = getattr(info, "vmem_capacity_bytes", None) or getattr(info, "vmem_bytes", None)
        if cap:
            return int(min(cap * 3 // 4, 100 * 1024 * 1024))
    except Exception:
        pass
    return default


def attention_forward(x, wq, wk, wv, wo, bo, *, heads, dim_head,
                      context=None, kv_include_self=False, use_bf16_mxu=True):
    """x: (b, n, dim); wq/wk/wv: (dim, inner); wo: (inner, dim); bo: (1, dim)."""
    if context is None:
        context = x
    if kv_include_self:
        context = jnp.concatenate((x, context), axis=1)

    b, n, dim = x.shape
    _, nk, _ = context.shape
    inner = heads * dim_head
    scale = dim_head ** (-0.5)

    # Compute dtype for MXU operands (accumulation stays f32 in-kernel).
    op_dtype = jnp.bfloat16 if (use_bf16_mxu or x.dtype == jnp.bfloat16) else x.dtype

    vmem_limit = _vmem_limit_bytes()
    q_cap = 512 if vmem_limit >= 96 * 1024 * 1024 else 256
    tq = _pick_q_tile(n, q_cap)
    n_pad = _round_up(n, tq)
    if n_pad != n:
        # Zero-padded query rows compute garbage-free values and are sliced off below.
        x = jnp.pad(x, ((0, 0), (0, n_pad - n), (0, 0)))
    grid = (b, n_pad // tq)

    # Weights in the compute dtype (halves weight DMA when bf16); wo pre-split per head.
    wq_c = wq.astype(op_dtype)
    wk_c = wk.astype(op_dtype)
    wv_c = wv.astype(op_dtype)
    wo3 = wo.reshape(heads, dim_head, dim).astype(op_dtype)
    bo_f = bo.astype(jnp.float32)

    kernel = functools.partial(_attention_kernel, heads=heads, dim_head=dim_head,
                               scale=scale, op_dtype=op_dtype)

    # ---- advisory cost estimate (matches the cached-K/V schedule).
    in_itemsize = np.dtype(x.dtype).itemsize
    w_itemsize = np.dtype(op_dtype).itemsize
    flops = b * (2 * n_pad * dim * inner            # Q projection (per q tile, summed)
                 + 4 * nk * dim * inner             # K,V projections (once per batch)
                 + 4 * n_pad * nk * inner           # QK^T and P@V
                 + 2 * n_pad * inner * dim)         # output projection
    bytes_accessed = (b * n_pad * dim * in_itemsize * 2                 # x in + out
                      + b * nk * dim * in_itemsize                      # context once/batch
                      + (3 * dim * inner + inner * dim) * w_itemsize + dim * 4)
    cost = pl.CostEstimate(flops=int(flops),
                           transcendentals=int(b * heads * n_pad * nk),
                           bytes_accessed=int(bytes_accessed))

    grid_spec = pltpu.PrefetchScalarGridSpec(
        num_scalar_prefetch=0,
        grid=grid,
        in_specs=[
            pl.BlockSpec((pl.Squeezed(), tq, dim), lambda i, j: (i, j, 0)),   # x (queries)
            pl.BlockSpec((pl.Squeezed(), nk, dim), lambda i, j: (i, 0, 0)),   # context (K/V)
            pl.BlockSpec((dim, inner), lambda i, j: (0, 0)),                  # wq
            pl.BlockSpec((dim, inner), lambda i, j: (0, 0)),                  # wk
            pl.BlockSpec((dim, inner), lambda i, j: (0, 0)),                  # wv
            pl.BlockSpec((heads, dim_head, dim), lambda i, j: (0, 0, 0)),     # wo (per head)
            pl.BlockSpec((1, dim), lambda i, j: (0, 0)),                      # bo
        ],
        out_specs=pl.BlockSpec((pl.Squeezed(), tq, dim), lambda i, j: (i, j, 0)),
        scratch_shapes=[
            pltpu.VMEM((heads, nk, dim_head), op_dtype),   # cached K (per batch element)
            pltpu.VMEM((heads, nk, dim_head), op_dtype),   # cached V
        ],
    )

    out = pl.pallas_call(
        kernel,
        out_shape=jax.ShapeDtypeStruct((b, n_pad, dim), x.dtype),
        grid_spec=grid_spec,
        compiler_params=pltpu.CompilerParams(
            # q-tile axis must be "arbitrary": it carries the K/V scratch within a batch.
            dimension_semantics=("parallel", "arbitrary"),
            vmem_limit_bytes=vmem_limit,
        ),
        cost_estimate=cost,
    )(x, context, wq_c, wk_c, wv_c, wo3, bo_f)

    return out[:, :n, :]


def reference_forward(x, wq, wk, wv, wo, bo, *, heads, dim_head):
    b, n, dim = x.shape
    scale = dim_head ** (-0.5)
    q = x @ wq
    k = x @ wk
    v = x @ wv

    def split_heads(t):
        return t.reshape(b, n, heads, dim_head).transpose(0, 2, 1, 3)

    q, k, v = map(split_heads, (q, k, v))
    dots = jnp.einsum('bhid,bhjd->bhij', q, k) * scale
    attn = jax.nn.softmax(dots, axis=-1)
    out = jnp.einsum('bhij,bhjd->bhid', attn, v)
    out = out.transpose(0, 2, 1, 3).reshape(b, n, heads * dim_head)
    return out @ wo + bo


if __name__ == "__main__":
    # Module defaults: heads=4, dim_head=64 -> inner_dim = 256
    batch, seq, dim = 2, 8, 32
    heads, dim_head = 4, 64
    inner = heads * dim_head

    key = jax.random.PRNGKey(0)
    kx, kq, kkv, ko, kb = jax.random.split(key, 5)

    x = jax.random.normal(kx, (batch, seq, dim), dtype=jnp.float32)

    # Deterministic params (PyTorch: to_q (inner,dim), to_kv (2*inner,dim),
    # to_out Linear(inner,dim)+bias). Stored here pre-transposed as (in, out).
    wq = jax.random.normal(kq, (dim, inner), dtype=jnp.float32) * 0.05
    wkv = jax.random.normal(kkv, (dim, 2 * inner), dtype=jnp.float32) * 0.05
    wk, wv = wkv[:, :inner], wkv[:, inner:]          # chunk(2, dim=-1) on the output
    wo = jax.random.normal(ko, (inner, dim), dtype=jnp.float32) * 0.05
    bo = jax.random.normal(kb, (1, dim), dtype=jnp.float32) * 0.05

    out = attention_forward(x, wq, wk, wv, wo, bo, heads=heads, dim_head=dim_head)
    out = jax.block_until_ready(out)

    ref = reference_forward(x, wq, wk, wv, wo, bo, heads=heads, dim_head=dim_head)
    assert out.shape == (batch, seq, dim)
    # Tolerance reflects bf16 MXU operands with f32 accumulation (flash-attention level).
    assert jnp.allclose(out, ref, atol=2e-2, rtol=2e-2), "mismatch vs JAX reference"

    print("KERNEL_OK")
</pallas_src>

<mosaic_0001>
module attributes {stable_mosaic.version = 11 : i64} {
  func.func @_attention_kernel(%arg0: i32, %arg1: i32, %arg2: memref<1x8x32xf32, #tpu.memory_space<vmem>>, %arg3: memref<1x8x32xf32, #tpu.memory_space<vmem>>, %arg4: memref<32x256xbf16, #tpu.memory_space<vmem>>, %arg5: memref<32x256xbf16, #tpu.memory_space<vmem>>, %arg6: memref<32x256xbf16, #tpu.memory_space<vmem>>, %arg7: memref<4x64x32xbf16, #tpu.memory_space<vmem>>, %arg8: memref<1x32xf32, #tpu.memory_space<vmem>>, %arg9: memref<1x8x32xf32, #tpu.memory_space<vmem>>, %arg10: memref<4x8x64xbf16, #tpu.memory_space<vmem>>, %arg11: memref<4x8x64xbf16, #tpu.memory_space<vmem>>) attributes {dimension_semantics = [#tpu.dimension_semantics<parallel>, #tpu.dimension_semantics<arbitrary>], iteration_bounds = array<i64: 2, 1>, scalar_prefetch = 0 : i64, scratch_operands = 2 : i64, tpu.core_type = #tpu.core_type<tc>, window_params = [{transform_indices = @transform_0, window_bounds = array<i64: 1, 8, 32>}, {transform_indices = @transform_1, window_bounds = array<i64: 1, 8, 32>}, {pipeline_mode = #tpu.pipeline_mode<synchronous>, transform_indices = @transform_2, window_bounds = array<i64: 32, 256>}, {pipeline_mode = #tpu.pipeline_mode<synchronous>, transform_indices = @transform_3, window_bounds = array<i64: 32, 256>}, {pipeline_mode = #tpu.pipeline_mode<synchronous>, transform_indices = @transform_4, window_bounds = array<i64: 32, 256>}, {pipeline_mode = #tpu.pipeline_mode<synchronous>, transform_indices = @transform_5, window_bounds = array<i64: 4, 64, 32>}, {pipeline_mode = #tpu.pipeline_mode<synchronous>, transform_indices = @transform_6, window_bounds = array<i64: 1, 32>}, {transform_indices = @transform_7, window_bounds = array<i64: 1, 8, 32>}]} {
    %c0_i32 = arith.constant 0 : i32
    %0 = arith.cmpi eq, %arg1, %c0_i32 : i32
    %1 = arith.extui %0 : i1 to i32
    %c0_i32_0 = arith.constant 0 : i32
    %2 = arith.cmpi ne, %1, %c0_i32_0 : i32
    scf.if %2 {
      %c0_27 = arith.constant 0 : index
      %c0_28 = arith.constant 0 : index
      %c0_29 = arith.constant 0 : index
      %39 = vector.load %arg3[%c0_27, %c0_28, %c0_29] : memref<1x8x32xf32, #tpu.memory_space<vmem>>, vector<1x8x32xf32>
      %40 = vector.shape_cast %39 : vector<1x8x32xf32> to vector<8x32xf32>
      %41 = arith.truncf %40 : vector<8x32xf32> to vector<8x32xbf16>
      %c0_30 = arith.constant 0 : index
      %c0_31 = arith.constant 0 : index
      %42 = vector.load %arg5[%c0_30, %c0_31] : memref<32x256xbf16, #tpu.memory_space<vmem>>, vector<32x256xbf16>
      %cst_32 = arith.constant dense<0.000000e+00> : vector<8x256xf32>
      %43 = tpu.matmul %41, %42, %cst_32 {dimension_numbers = #tpu.dot_dimension_numbers<[1], [0], [0], [1], [0, 0, 1, 1], [], []>} : vector<8x32xbf16>, vector<32x256xbf16>, vector<8x256xf32> -> vector<8x256xf32>
      %c0_33 = arith.constant 0 : index
      %c0_34 = arith.constant 0 : index
      %44 = vector.load %arg6[%c0_33, %c0_34] : memref<32x256xbf16, #tpu.memory_space<vmem>>, vector<32x256xbf16>
      %cst_35 = arith.constant dense<0.000000e+00> : vector<8x256xf32>
      %45 = tpu.matmul %41, %44, %cst_35 {dimension_numbers = #tpu.dot_dimension_numbers<[1], [0], [0], [1], [0, 0, 1, 1], [], []>} : vector<8x32xbf16>, vector<32x256xbf16>, vector<8x256xf32> -> vector<8x256xf32>
      %46 = vector.shape_cast %43 : vector<8x256xf32> to vector<8x4x64xf32>
      %47 = tpu.transpose %46, [1, 0, 2] : vector<8x4x64xf32> -> vector<4x8x64xf32>
      %48 = arith.truncf %47 : vector<4x8x64xf32> to vector<4x8x64xbf16>
      %c0_36 = arith.constant 0 : index
      %c0_37 = arith.constant 0 : index
      %c0_38 = arith.constant 0 : index
      %49 = vector.load %arg10[%c0_36, %c0_37, %c0_38] : memref<4x8x64xbf16, #tpu.memory_space<vmem>>, vector<4x8x64xbf16>
      tpu.vector_store %arg10[%c0_36, %c0_37, %c0_38], %48 {strides = array<i32>} : memref<4x8x64xbf16, #tpu.memory_space<vmem>>, vector<4x8x64xbf16>,
      %50 = vector.shape_cast %45 : vector<8x256xf32> to vector<8x4x64xf32>
      %51 = tpu.transpose %50, [1, 0, 2] : vector<8x4x64xf32> -> vector<4x8x64xf32>
      %52 = arith.truncf %51 : vector<4x8x64xf32> to vector<4x8x64xbf16>
      %c0_39 = arith.constant 0 : index
      %c0_40 = arith.constant 0 : index
      %c0_41 = arith.constant 0 : index
      %53 = vector.load %arg11[%c0_39, %c0_40, %c0_41] : memref<4x8x64xbf16, #tpu.memory_space<vmem>>, vector<4x8x64xbf16>
      tpu.vector_store %arg11[%c0_39, %c0_40, %c0_41], %52 {strides = array<i32>} : memref<4x8x64xbf16, #tpu.memory_space<vmem>>, vector<4x8x64xbf16>,
    } else {
    }
    %c0 = arith.constant 0 : index
    %c0_1 = arith.constant 0 : index
    %c0_2 = arith.constant 0 : index
    %3 = vector.load %arg2[%c0, %c0_1, %c0_2] : memref<1x8x32xf32, #tpu.memory_space<vmem>>, vector<1x8x32xf32>
    %4 = vector.shape_cast %3 : vector<1x8x32xf32> to vector<8x32xf32>
    %5 = arith.truncf %4 : vector<8x32xf32> to vector<8x32xbf16>
    %c0_3 = arith.constant 0 : index
    %c0_4 = arith.constant 0 : index
    %6 = vector.load %arg4[%c0_3, %c0_4] : memref<32x256xbf16, #tpu.memory_space<vmem>>, vector<32x256xbf16>
    %cst = arith.constant dense<0.000000e+00> : vector<8x256xf32>
    %7 = tpu.matmul %5, %6, %cst {dimension_numbers = #tpu.dot_dimension_numbers<[1], [0], [0], [1], [0, 0, 1, 1], [], []>} : vector<8x32xbf16>, vector<32x256xbf16>, vector<8x256xf32> -> vector<8x256xf32>
    %cst_5 = arith.constant 1.250000e-01 : f32
    %8 = vector.broadcast %cst_5 : f32 to vector<8x256xf32>
    %9 = arith.mulf %7, %8 : vector<8x256xf32>
    %10 = vector.shape_cast %9 : vector<8x256xf32> to vector<8x4x64xf32>
    %11 = tpu.transpose %10, [1, 0, 2] : vector<8x4x64xf32> -> vector<4x8x64xf32>
    %12 = arith.truncf %11 : vector<4x8x64xf32> to vector<4x8x64xbf16>
    %c0_6 = arith.constant 0 : index
    %c0_7 = arith.constant 0 : index
    %c0_8 = arith.constant 0 : index
    %13 = vector.load %arg10[%c0_6, %c0_7, %c0_8] : memref<4x8x64xbf16, #tpu.memory_space<vmem>>, vector<4x8x64xbf16>
    %c0_9 = arith.constant 0 : index
    %c0_10 = arith.constant 0 : index
    %c0_11 = arith.constant 0 : index
    %14 = vector.load %arg11[%c0_9, %c0_10, %c0_11] : memref<4x8x64xbf16, #tpu.memory_space<vmem>>, vector<4x8x64xbf16>
    "tpu.trace_start"() <{level = 10 : i32, message = "hqd,hkd->hqk"}> : () -> ()
    %cst_12 = arith.constant dense<0.000000e+00> : vector<4x8x8xf32>
    %15 = tpu.matmul %12, %13, %cst_12 {dimension_numbers = #tpu.dot_dimension_numbers<[2], [2], [1], [1], [0, 0, 0, 1, 1, 1], [0], [0]>} : vector<4x8x64xbf16>, vector<4x8x64xbf16>, vector<4x8x8xf32> -> vector<4x8x8xf32>
    "tpu.trace_stop"() : () -> ()
    %cst_13 = arith.constant dense<0xFF800000> : vector<4x8xf32>
    %16 = vector.multi_reduction <maximumf>, %15, %cst_13 [2] : vector<4x8x8xf32> to vector<4x8xf32>
    %17 = vector.shape_cast %16 : vector<4x8xf32> to vector<4x8x1xf32>
    %18 = vector.broadcast %17 : vector<4x8x1xf32> to vector<4x8x8xf32>
    %19 = arith.subf %15, %18 : vector<4x8x8xf32>
    %20 = math.exp %19 : vector<4x8x8xf32>
    %cst_14 = arith.constant dense<0.000000e+00> : vector<4x8xf32>
    %21 = vector.multi_reduction <add>, %20, %cst_14 [2] : vector<4x8x8xf32> to vector<4x8xf32>
    %22 = vector.shape_cast %21 : vector<4x8xf32> to vector<4x8x1xf32>
    %23 = arith.truncf %20 : vector<4x8x8xf32> to vector<4x8x8xbf16>
    "tpu.trace_start"() <{level = 10 : i32, message = "hqk,hkd->hqd"}> : () -> ()
    %cst_15 = arith.constant dense<0.000000e+00> : vector<4x8x64xf32>
    %24 = tpu.matmul %23, %14, %cst_15 {dimension_numbers = #tpu.dot_dimension_numbers<[2], [1], [1], [2], [0, 0, 0, 1, 1, 2], [0], [0]>} : vector<4x8x8xbf16>, vector<4x8x64xbf16>, vector<4x8x64xf32> -> vector<4x8x64xf32>
    "tpu.trace_stop"() : () -> ()
    %cst_16 = arith.constant 1.000000e+00 : f32
    %25 = vector.broadcast %cst_16 : f32 to vector<4x8x1xf32>
    %26 = arith.divf %25, %22 : vector<4x8x1xf32>
    %27 = vector.broadcast %26 : vector<4x8x1xf32> to vector<4x8x64xf32>
    %28 = arith.mulf %24, %27 : vector<4x8x64xf32>
    %29 = arith.truncf %28 : vector<4x8x64xf32> to vector<4x8x64xbf16>
    %c0_17 = arith.constant 0 : index
    %c0_18 = arith.constant 0 : index
    %c0_19 = arith.constant 0 : index
    %30 = vector.load %arg7[%c0_17, %c0_18, %c0_19] : memref<4x64x32xbf16, #tpu.memory_space<vmem>>, vector<4x64x32xbf16>
    "tpu.trace_start"() <{level = 10 : i32, message = "hqd,hdo->hqo"}> : () -> ()
    %cst_20 = arith.constant dense<0.000000e+00> : vector<4x8x32xf32>
    %31 = tpu.matmul %29, %30, %cst_20 {dimension_numbers = #tpu.dot_dimension_numbers<[2], [1], [1], [2], [0, 0, 0, 1, 1, 2], [0], [0]>} : vector<4x8x64xbf16>, vector<4x64x32xbf16>, vector<4x8x32xf32> -> vector<4x8x32xf32>
    "tpu.trace_stop"() : () -> ()
    %cst_21 = arith.constant dense<0.000000e+00> : vector<8x32xf32>
    %32 = vector.multi_reduction <add>, %31, %cst_21 [0] : vector<4x8x32xf32> to vector<8x32xf32>
    %c0_22 = arith.constant 0 : index
    %c0_23 = arith.constant 0 : index
    %33 = vector.load %arg8[%c0_22, %c0_23] : memref<1x32xf32, #tpu.memory_space<vmem>>, vector<1x32xf32>
    %34 = vector.broadcast %33 : vector<1x32xf32> to vector<8x32xf32>
    %35 = arith.addf %32, %34 : vector<8x32xf32>
    %c0_24 = arith.constant 0 : index
    %c0_25 = arith.constant 0 : index
    %c0_26 = arith.constant 0 : index
    %36 = vector.load %arg9[%c0_24, %c0_25, %c0_26] : memref<1x8x32xf32, #tpu.memory_space<vmem>>, vector<1x8x32xf32>
    %37 = vector.shape_cast %36 : vector<1x8x32xf32> to vector<8x32xf32>
    %38 = vector.shape_cast %35 : vector<8x32xf32> to vector<1x8x32xf32>
    tpu.vector_store %arg9[%c0_24, %c0_25, %c0_26], %38 {strides = array<i32>} : memref<1x8x32xf32, #tpu.memory_space<vmem>>, vector<1x8x32xf32>,
    return
  }
  func.func @transform_0(%arg0: i32, %arg1: i32) -> (i32, i32, i32) {
    %c0_i32 = arith.constant 0 : i32
    %c0_i32_0 = arith.constant 0 : i32
    return %arg0, %arg1, %c0_i32 : i32, i32, i32
  }
  func.func @transform_1(%arg0: i32, %arg1: i32) -> (i32, i32, i32) {
    %c0_i32 = arith.constant 0 : i32
    %c0_i32_0 = arith.constant 0 : i32
    %c0_i32_1 = arith.constant 0 : i32
    return %arg0, %c0_i32, %c0_i32_0 : i32, i32, i32
  }
  func.func @transform_2(%arg0: i32, %arg1: i32) -> (i32, i32) {
    %c0_i32 = arith.constant 0 : i32
    %c0_i32_0 = arith.constant 0 : i32
    %c0_i32_1 = arith.constant 0 : i32
    return %c0_i32, %c0_i32_0 : i32, i32
  }
  func.func @transform_3(%arg0: i32, %arg1: i32) -> (i32, i32) {
    %c0_i32 = arith.constant 0 : i32
    %c0_i32_0 = arith.constant 0 : i32
    %c0_i32_1 = arith.constant 0 : i32
    return %c0_i32, %c0_i32_0 : i32, i32
  }
  func.func @transform_4(%arg0: i32, %arg1: i32) -> (i32, i32) {
    %c0_i32 = arith.constant 0 : i32
    %c0_i32_0 = arith.constant 0 : i32
    %c0_i32_1 = arith.constant 0 : i32
    return %c0_i32, %c0_i32_0 : i32, i32
  }
  func.func @transform_5(%arg0: i32, %arg1: i32) -> (i32, i32, i32) {
    %c0_i32 = arith.constant 0 : i32
    %c0_i32_0 = arith.constant 0 : i32
    %c0_i32_1 = arith.constant 0 : i32
    %c0_i32_2 = arith.constant 0 : i32
    return %c0_i32, %c0_i32_0, %c0_i32_1 : i32, i32, i32
  }
  func.func @transform_6(%arg0: i32, %arg1: i32) -> (i32, i32) {
    %c0_i32 = arith.constant 0 : i32
    %c0_i32_0 = arith.constant 0 : i32
    %c0_i32_1 = arith.constant 0 : i32
    return %c0_i32, %c0_i32_0 : i32, i32
  }
  func.func @transform_7(%arg0: i32, %arg1: i32) -> (i32, i32, i32) {
    %c0_i32 = arith.constant 0 : i32
    %c0_i32_0 = arith.constant 0 : i32
    return %arg0, %arg1, %c0_i32 : i32, i32, i32
  }
}

</mosaic_0001>

<llo_original>
// kernel: tpu_custom_call.1
$region0: #{tpu_custom_call.1}
  #allocation0 [shape = 'u32[]', space=smem, size = 0x4, offset = 0x4, fixed_abs, tag = 'smem constant byte address 0x4 - core index']
  #allocation1 [shape = 'u32[144,128]{1,0:T(1,128)}', space=vmem, size = 0x12000, scoped, tag = 'internal scratch']
  #allocation2 [shape = 'bf16[4,8,64]{2,1,0:T(8,128)(2,1)}', space=vmem, size = 0x2000, scoped, tag = 'scratch operand']
  #allocation3 [shape = 'bf16[4,8,64]{2,1,0:T(8,128)(2,1)}', space=vmem, size = 0x2000, scoped, tag = 'scratch operand']
  %s0 = inlined_call_operand.vmem [shape: f32[2,8,32], index: 0, kind: input, shape index: {}]
  %s1 = inlined_call_operand.vmem [shape: f32[2,8,32], index: 1, kind: input, shape index: {}]
  %s2 = inlined_call_operand.vmem [shape: bf16[32,256], index: 2, kind: input, shape index: {}]
  %s3 = inlined_call_operand.vmem [shape: bf16[32,256], index: 3, kind: input, shape index: {}]
  %s4 = inlined_call_operand.vmem [shape: bf16[32,256], index: 4, kind: input, shape index: {}]
  %s5 = inlined_call_operand.vmem [shape: bf16[4,64,32], index: 5, kind: input, shape index: {}]
  %s6 = inlined_call_operand.vmem [shape: f32[1,32], index: 6, kind: input, shape index: {}]
  %s7 = inlined_call_operand.hbm [shape: f32[2,8,32], index: 7, kind: output, shape index: {}]
  %s8 = sld [smem:[#allocation0]]
  $region65: #{tpu_custom_call.1} parent=0
    _
  %s10 = ssub.s32 1, %s8
  %s11 = scalar_select 0, %s10, %s8
  $region1: #{tpu_custom_call.1} parent=0
    #allocation4 [shape = 'u8[8192]{0}', space=vmem, size = 0x2000, scoped, tag = 'output window, operand 0']
    #allocation5 [shape = 's32[2]{0}', space=sflag, size = 0x8, scoped, tag = 'scoped memory for tpu_custom_call.1']
    %12 = vsyncpa [#allocation5], 0
    %s13 = scalar_lea.sflag [#allocation5], 1
    %14 = vsyncpa %s13, 0
    loop: start=0, step=1, limit=4
    $region2: #{tpu_custom_call.1} parent=1 // loop_pre_header
      _
    $region3: #{tpu_custom_call.1} parent=1 // loop_header
      %s16 = sphi 0, %s20
      %p17 = scmp.ge.s32.totalorder %s16, 4
      %s23 = sphi 0, %s35
      %s24 = sphi 0, %s31
      %s25 = sphi 0, %s23
      %s26 = sphi 0, %s24
      %s27 = sphi 0, %s25
      %s28 = sphi 0, %s26
      %s40 = sphi 0, %s42
      %s43 = sphi 0, %s40
      %s44 = sphi 0, %s43
      %s60 = sphi 0, %s44
      %s66 = sphi 0, %s68
      %s69 = sphi 0, %s66
      %s70 = sphi 0, %s69
      %s86 = sphi 0, %s70
      %s90 = sphi 0, %s90
      %s92 = sphi 0, %s90
      %s93 = sphi 0, %s92
      %s107 = sphi 0, %s93
      %s111 = sphi 0, %s111
      %s113 = sphi 0, %s111
      %s114 = sphi 0, %s113
      %s128 = sphi 0, %s114
      %s132 = sphi 0, %s132
      %s134 = sphi 0, %s132
      %s135 = sphi 0, %s134
      %s149 = sphi 0, %s135
      %s153 = sphi 0, %s153
      %s155 = sphi 0, %s153
      %s156 = sphi 0, %s155
      %s170 = sphi 0, %s156
      %s174 = sphi 0, %s174
      %s176 = sphi 0, %s174
      %s177 = sphi 0, %s176
      %s191 = sphi 0, %s177
      %s199 = sphi 0, %s201
      %s202 = sphi 0, %s199
      %s203 = sphi 0, %s202
      %s219 = sphi 0, %s203
    $region4: #{tpu_custom_call.1} parent=1 // loop_header_branch
      %19 = sbr.rel (%p17) target = $region8
    $region5: #{tpu_custom_call.1} parent=1 // loop_body
      %s21 = ssub.s32 %s16, 1
      %s22 = ssub.s32 %s16, 2
      %s29 = sadd.s32 1, %s24
      %p30 = scmp.ge.s32.totalorder %s29, 1
      %s31 = scalar_select %p30, 0, %s29
      %s32 = sadd.s32 1, %s23
      %s33 = scalar_select %p30, %s32, %s23
      %p34 = scmp.ge.s32.totalorder %s33, 2
      %s35 = scalar_select %p34, 0, %s33
      %s36 = ssub.s32 %s23, %s35
      %s37 = ssub.s32 %s24, %s31
      %s38 = sor.u32 %s36, %s37
      %p39 = scmp.eq.s32.totalorder %s38, 0
      %s41 = sadd.s32 %s40, 1
      %s42 = scalar_select %p39, %s40, %s41
      %p45 = pneg %p39
      %p46 = scmp.eq.s32.totalorder %s16, 1
      %p47 = por %p45, %p46
      %p48 = scmp.ne.s32.totalorder %s40, %s43
      %p49 = scmp.eq.s32.totalorder %s16, 0
      %p50 = por %p48, %p49
      %p51 = scmp.ne.s32.totalorder %s40, %s43
      %p52 = scmp.eq.s32.totalorder %s21, 1
      %p53 = por %p51, %p52
      %p54 = scmp.ne.s32.totalorder %s43, %s44
      %p55 = scmp.eq.s32.totalorder %s21, 0
      %p56 = por %p54, %p55
      %p57 = scmp.ne.s32.totalorder %s43, %s44
      %p58 = scmp.eq.s32.totalorder %s22, 1
      %p59 = por %p57, %p58
      %p61 = scmp.ne.s32.totalorder %s44, %s60
      %p62 = scmp.eq.s32.totalorder %s22, 0
      %p63 = por %p61, %p62
      %s64 = ssub.s32 %s23, %s35
      %p65 = scmp.eq.s32.totalorder %s64, 0
      %s67 = sadd.s32 %s66, 1
      %s68 = scalar_select %p65, %s66, %s67
      %p71 = pneg %p65
      %p72 = scmp.eq.s32.totalorder %s16, 1
      %p73 = por %p71, %p72
      %p74 = scmp.ne.s32.totalorder %s66, %s69
      %p75 = scmp.eq.s32.totalorder %s16, 0
      %p76 = por %p74, %p75
      %p77 = scmp.ne.s32.totalorder %s66, %s69
      %p78 = scmp.eq.s32.totalorder %s21, 1
      %p79 = por %p77, %p78
      %p80 = scmp.ne.s32.totalorder %s69, %s70
      %p81 = scmp.eq.s32.totalorder %s21, 0
      %p82 = por %p80, %p81
      %p83 = scmp.ne.s32.totalorder %s69, %s70
      %p84 = scmp.eq.s32.totalorder %s22, 1
      %p85 = por %p83, %p84
      %p87 = scmp.ne.s32.totalorder %s70, %s86
      %p88 = scmp.eq.s32.totalorder %s22, 0
      %p89 = por %p87, %p88
      %s91 = sadd.s32 %s90, 1
      %p94 = scmp.eq.s32.totalorder %s16, 1
      %p95 = scmp.ne.s32.totalorder %s90, %s92
      %p96 = scmp.eq.s32.totalorder %s16, 0
      %p97 = por %p95, %p96
      %p98 = scmp.ne.s32.totalorder %s90, %s92
      %p99 = scmp.eq.s32.totalorder %s21, 1
      %p100 = por %p98, %p99
      %p101 = scmp.ne.s32.totalorder %s92, %s93
      %p102 = scmp.eq.s32.totalorder %s21, 0
      %p103 = por %p101, %p102
      %p104 = scmp.ne.s32.totalorder %s92, %s93
      %p105 = scmp.eq.s32.totalorder %s22, 1
      %p106 = por %p104, %p105
      %p108 = scmp.ne.s32.totalorder %s93, %s107
      %p109 = scmp.eq.s32.totalorder %s22, 0
      %p110 = por %p108, %p109
      %s112 = sadd.s32 %s111, 1
      %p115 = scmp.eq.s32.totalorder %s16, 1
      %p116 = scmp.ne.s32.totalorder %s111, %s113
      %p117 = scmp.eq.s32.totalorder %s16, 0
      %p118 = por %p116, %p117
      %p119 = scmp.ne.s32.totalorder %s111, %s113
      %p120 = scmp.eq.s32.totalorder %s21, 1
      %p121 = por %p119, %p120
      %p122 = scmp.ne.s32.totalorder %s113, %s114
      %p123 = scmp.eq.s32.totalorder %s21, 0
      %p124 = por %p122, %p123
      %p125 = scmp.ne.s32.totalorder %s113, %s114
      %p126 = scmp.eq.s32.totalorder %s22, 1
      %p127 = por %p125, %p126
      %p129 = scmp.ne.s32.totalorder %s114, %s128
      %p130 = scmp.eq.s32.totalorder %s22, 0
      %p131 = por %p129, %p130
      %s133 = sadd.s32 %s132, 1
      %p136 = scmp.eq.s32.totalorder %s16, 1
      %p137 = scmp.ne.s32.totalorder %s132, %s134
      %p138 = scmp.eq.s32.totalorder %s16, 0
      %p139 = por %p137, %p138
      %p140 = scmp.ne.s32.totalorder %s132, %s134
      %p141 = scmp.eq.s32.totalorder %s21, 1
      %p142 = por %p140, %p141
      %p143 = scmp.ne.s32.totalorder %s134, %s135
      %p144 = scmp.eq.s32.totalorder %s21, 0
      %p145 = por %p143, %p144
      %p146 = scmp.ne.s32.totalorder %s134, %s135
      %p147 = scmp.eq.s32.totalorder %s22, 1
      %p148 = por %p146, %p147
      %p150 = scmp.ne.s32.totalorder %s135, %s149
      %p151 = scmp.eq.s32.totalorder %s22, 0
      %p152 = por %p150, %p151
      %s154 = sadd.s32 %s153, 1
      %p157 = scmp.eq.s32.totalorder %s16, 1
      %p158 = scmp.ne.s32.totalorder %s153, %s155
      %p159 = scmp.eq.s32.totalorder %s16, 0
      %p160 = por %p158, %p159
      %p161 = scmp.ne.s32.totalorder %s153, %s155
      %p162 = scmp.eq.s32.totalorder %s21, 1
      %p163 = por %p161, %p162
      %p164 = scmp.ne.s32.totalorder %s155, %s156
      %p165 = scmp.eq.s32.totalorder %s21, 0
      %p166 = por %p164, %p165
      %p167 = scmp.ne.s32.totalorder %s155, %s156
      %p168 = scmp.eq.s32.totalorder %s22, 1
      %p169 = por %p167, %p168
      %p171 = scmp.ne.s32.totalorder %s156, %s170
      %p172 = scmp.eq.s32.totalorder %s22, 0
      %p173 = por %p171, %p172
      %s175 = sadd.s32 %s174, 1
      %p178 = scmp.eq.s32.totalorder %s16, 1
      %p179 = scmp.ne.s32.totalorder %s174, %s176
      %p180 = scmp.eq.s32.totalorder %s16, 0
      %p181 = por %p179, %p180
      %p182 = scmp.ne.s32.totalorder %s174, %s176
      %p183 = scmp.eq.s32.totalorder %s21, 1
      %p184 = por %p182, %p183
      %p185 = scmp.ne.s32.totalorder %s176, %s177
      %p186 = scmp.eq.s32.totalorder %s21, 0
      %p187 = por %p185, %p186
      %p188 = scmp.ne.s32.totalorder %s176, %s177
      %p189 = scmp.eq.s32.totalorder %s22, 1
      %p190 = por %p188, %p189
      %p192 = scmp.ne.s32.totalorder %s177, %s191
      %p193 = scmp.eq.s32.totalorder %s22, 0
      %p194 = por %p192, %p193
      %s195 = ssub.s32 %s23, %s35
      %s196 = ssub.s32 %s24, %s31
      %s197 = sor.u32 %s195, %s196
      %p198 = scmp.eq.s32.totalorder %s197, 0
      %s200 = sadd.s32 %s199, 1
      %s201 = scalar_select %p198, %s199, %s200
      %p204 = pneg %p198
      %p205 = scmp.eq.s32.totalorder %s16, 1
      %p206 = por %p204, %p205
      %p207 = scmp.ne.s32.totalorder %s199, %s202
      %p208 = scmp.eq.s32.totalorder %s16, 0
      %p209 = por %p207, %p208
      %p210 = scmp.ne.s32.totalorder %s199, %s202
      %p211 = scmp.eq.s32.totalorder %s21, 1
      %p212 = por %p210, %p211
      %p213 = scmp.ne.s32.totalorder %s202, %s203
      %p214 = scmp.eq.s32.totalorder %s21, 0
      %p215 = por %p213, %p214
      %p216 = scmp.ne.s32.totalorder %s202, %s203
      %p217 = scmp.eq.s32.totalorder %s22, 1
      %p218 = por %p216, %p217
      %p220 = scmp.ne.s32.totalorder %s203, %s219
      %p221 = scmp.eq.s32.totalorder %s22, 0
      %p222 = por %p220, %p221
      %p223 = scmp.le.s32.totalorder 1, %s16
      %p224 = scmp.lt.s32.totalorder %s16, 3
      %p225 = pnand %p223, %p224
      %p226 = pneg %p225
      // Predicated region
      $region9: #{tpu_custom_call.1} parent=5 // pred_check
        _
      $region10: #{tpu_custom_call.1} parent=5 // pred_check_branch
        %228 = sbr.rel (%p225) target = $region12
      $region11: #{tpu_custom_call.1} parent=5 // pred_region
        %s229 = ssub.s32 %s16, 1
        // Predicated region
        $region13: #{tpu_custom_call.1} parent=11 // pred_check
          %p230 = pneg %p103
        $region14: #{tpu_custom_call.1} parent=11 // pred_check_branch
          %232 = sbr.rel (%p230) target = $region16
        $region15: #{tpu_custom_call.1} parent=11 // pred_region
          _
        $region16: #{tpu_custom_call.1} parent=11 // pred_fallthru
          _
        // Predicated region
        $region17: #{tpu_custom_call.1} parent=11 // pred_check
          %p233 = pneg %p124
        $region18: #{tpu_custom_call.1} parent=11 // pred_check_branch
          %235 = sbr.rel (%p233) target = $region20
        $region19: #{tpu_custom_call.1} parent=11 // pred_region
          _
        $region20: #{tpu_custom_call.1} parent=11 // pred_fallthru
          _
        // Predicated region
        $region21: #{tpu_custom_call.1} parent=11 // pred_check
          %p236 = pneg %p145
        $region22: #{tpu_custom_call.1} parent=11 // pred_check_branch
          %238 = sbr.rel (%p236) target = $region24
        $region23: #{tpu_custom_call.1} parent=11 // pred_region
          _
        $region24: #{tpu_custom_call.1} parent=11 // pred_fallthru
          _
        // Predicated region
        $region25: #{tpu_custom_call.1} parent=11 // pred_check
          %p239 = pneg %p166
        $region26: #{tpu_custom_call.1} parent=11 // pred_check_branch
          %241 = sbr.rel (%p239) target = $region28
        $region27: #{tpu_custom_call.1} parent=11 // pred_region
          _
        $region28: #{tpu_custom_call.1} parent=11 // pred_fallthru
          _
        // Predicated region
        $region29: #{tpu_custom_call.1} parent=11 // pred_check
          %p242 = pneg %p187
        $region30: #{tpu_custom_call.1} parent=11 // pred_check_branch
          %244 = sbr.rel (%p242) target = $region32
        $region31: #{tpu_custom_call.1} parent=11 // pred_region
          _
        $region32: #{tpu_custom_call.1} parent=11 // pred_fallthru
          _
      $region12: #{tpu_custom_call.1} parent=5 // pred_fallthru
        _
      %p245 = scmp.lt.s32.totalorder %s16, 2
      // Predicated region
      $region33: #{tpu_custom_call.1} parent=5 // pred_check
        %p246 = pneg %p245
      $region34: #{tpu_custom_call.1} parent=5 // pred_check_branch
        %248 = sbr.rel (%p246) target = $region36
      $region35: #{tpu_custom_call.1} parent=5 // pred_region
        // Predicated region
        $region37: #{tpu_custom_call.1} parent=35 // pred_check
          %p249 = pneg %p50
        $region38: #{tpu_custom_call.1} parent=35 // pred_check_branch
          %251 = sbr.rel (%p249) target = $region40
        $region39: #{tpu_custom_call.1} parent=35 // pred_region
          %p252 = scmp.lt.s32.totalorder %s23, 1
          %s253 = scalar_select %p252, %s23, 1
          %p254 = scmp.lt.s32.totalorder %s24, 0
          %s255 = scalar_select %p254, %s24, 0
          %s256 = sadd.s32 %s255, %s253
          %s257 = smul.addr %s256, 8
          %s258 = scalar_lea.vmem %s0, %s257
        $region40: #{tpu_custom_call.1} parent=35 // pred_fallthru
          _
        // Predicated region
        $region41: #{tpu_custom_call.1} parent=35 // pred_check
          %p259 = pneg %p76
        $region42: #{tpu_custom_call.1} parent=35 // pred_check_branch
          %261 = sbr.rel (%p259) target = $region44
        $region43: #{tpu_custom_call.1} parent=35 // pred_region
          %p262 = scmp.lt.s32.totalorder %s23, 1
          %s263 = scalar_select %p262, %s23, 1
          %s264 = smul.addr %s263, 8
          %s265 = scalar_lea.vmem %s1, %s264
        $region44: #{tpu_custom_call.1} parent=35 // pred_fallthru
          _
      $region36: #{tpu_custom_call.1} parent=5 // pred_fallthru
        _
      %p266 = scmp.le.s32.totalorder 1, %s16
      %p267 = scmp.lt.s32.totalorder %s16, 3
      %p268 = pnand %p266, %p267
      %p269 = pneg %p268
      // Predicated region
      $region45: #{tpu_custom_call.1} parent=5 // pred_check
        _
      $region46: #{tpu_custom_call.1} parent=5 // pred_check_branch
        %271 = sbr.rel (%p268) target = $region48
      $region47: #{tpu_custom_call.1} parent=5 // pred_region
        %s272 = ssub.s32 %s16, 1
        %p273 = scmp.lt.s32.totalorder %s25, 1
        %s274 = scalar_select %p273, %s25, 1
        %p275 = scmp.lt.s32.totalorder %s26, 0
        %s276 = scalar_select %p275, %s26, 0
        %s277 = sadd.s32 %s276, %s274
        %s278 = smul.addr %s277, 8
        %s279 = scalar_lea.vmem %s0, %s278
        %p280 = pneg %p56
        %p281 = pneg %p53
        %p282 = scmp.lt.s32.totalorder %s25, 1
        %s283 = scalar_select %p282, %s25, 1
        %s284 = smul.addr %s283, 8
        %s285 = scalar_lea.vmem %s1, %s284
        %p286 = pneg %p82
        %p287 = pneg %p79
        %p288 = pneg %p103
        %p289 = pneg %p100
        %p290 = pneg %p124
        %p291 = pneg %p121
        %p292 = pneg %p145
        %p293 = pneg %p142
        %p294 = pneg %p166
        %p295 = pneg %p163
        %p296 = pneg %p187
        %p297 = pneg %p184
        %p298 = pneg %p215
        %p299 = pneg %p212
        %s300 = sand.u32 %s202, 1
        %s301 = scalar_lea.sflag [#allocation5], %s300
        %s302 = sand.u32 %s202, 1
        %s303 = smul.addr %s302, 8
        %s304 = scalar_lea.vmem [#allocation4], %s303
        %p305 = scmp.lt.s32.totalorder %s25, 1
        %s306 = scalar_select %p305, %s25, 1
        %p307 = scmp.lt.s32.totalorder %s26, 0
        %s308 = scalar_select %p307, %s26, 0
        %s309 = sadd.s32 %s308, %s306
        %s310 = smul.addr %s309, 8
        %s311 = scalar_lea.vmem %s0, %s310
        %p312 = scmp.lt.s32.totalorder %s25, 1
        %s313 = scalar_select %p312, %s25, 1
        %s314 = smul.addr %s313, 8
        %s315 = scalar_lea.vmem %s1, %s314
        %p317 = scmp.eq.s32.totalorder %s26, 0
        // Predicated region
        $region49: #{tpu_custom_call.1} parent=47 // pred_check
          %p318 = pneg %p317
        $region50: #{tpu_custom_call.1} parent=47 // pred_check_branch
          %320 = sbr.rel (%p318) target = $region52
        $region51: #{tpu_custom_call.1} parent=47 // pred_region
          %v321 = vld [vmem:[%s315] sm:$0xff]
          %v322 = vpack.c.bf16 %v321, %v321
          %v323 = vld [vmem:[%s3] sm:$0xff]
          %v324 = vld [vmem:[%s3 + $0x8] sm:$0xff]
          %v325 = vld [vmem:[%s3 + $0x10] sm:$0xff]
          %v326 = vld [vmem:[%s3 + $0x18] sm:$0xff]
          %v331 = vunpack.c.l.b16 %v323
          %v332 = vunpack.c.h.b16 %v323
          %v333 = vunpack.c.l.b16 %v324
          %v334 = vunpack.c.h.b16 %v324
          %v335 = vunpack.c.l.b16 %v325
          %v336 = vunpack.c.h.b16 %v325
          %v337 = vunpack.c.l.b16 %v326
          %v338 = vunpack.c.h.b16 %v326
          %v339 = vpack.c.b16 %v333, %v331
          %v340 = vpack.c.b16 %v334, %v332
          %v341 = vpack.c.b16 %v337, %v335
          %v342 = vpack.c.b16 %v338, %v336
          %vm347 = vcmask 261120
          %v349 = vsel %vm347, %v322, 0
          %351 = vmatprep.subr.bf16.mxu0 %v340
          %352 = vmatpush1.bf16.msra.mxu0 %v339
          %353 = vmatprep.subr.bf16.mxu0 %v342
          %354 = vmatpush1.bf16.msra.mxu0 %v341
          %355 = vmatprep.subr.bf16.mxu0 0
          %356 = vmatpush1.bf16.msra.mxu0 0
          %357 = vmatprep.subr.bf16.mxu0 0
          %358 = vmatpush1.bf16.msra.mxu0 0
          %359 = vmatprep.subr.bf16.mxu0 0
          %360 = vmatpush1.bf16.msra.mxu0 0
          %361 = vmatprep.subr.bf16.mxu0 0
          %362 = vmatpush1.bf16.msra.mxu0 0
          %363 = vmatprep.subr.bf16.mxu0 0
          %364 = vmatpush1.bf16.msra.mxu0 0
          %365 = vmatprep.subr.bf16.mxu0 0
          %366 = vmatpush1.bf16.msra.mxu0 0
          %367 = vmatprep.subr.bf16.mxu0 0
          %368 = vmatpush1.bf16.msra.mxu0 0
          %369 = vmatprep.subr.bf16.mxu0 0
          %370 = vmatpush1.bf16.msra.mxu0 0
          %371 = vmatprep.subr.bf16.mxu0 0
          %372 = vmatpush1.bf16.msra.mxu0 0
          %373 = vmatprep.subr.bf16.mxu0 0
          %374 = vmatpush1.bf16.msra.mxu0 0
          %375 = vmatprep.subr.bf16.mxu0 0
          %376 = vmatpush1.bf16.msra.mxu0 0
          %377 = vmatprep.subr.bf16.mxu0 0
          %378 = vmatpush1.bf16.msra.mxu0 0
          %379 = vmatprep.subr.bf16.mxu0 0
          %380 = vmatpush1.bf16.msra.mxu0 0
          %381 = vmatprep.subr.bf16.mxu0 0
          %382 = vmatpush1.bf16.msra.mxu0 0
          %383 = vmatprep.mubr.bf16.mxu0 0
          %384 = vmatmul.mubr.bf16.gmra.mrb[0].mxu0 %v349
          %v385 = vpop.f32.mrb[0].mxu0
          %v386 = vadd.f32 0.0, %v385
          %v387 = vpop.f32.mrb[0].mxu0
          %v388 = vadd.f32 0.0, %v387
          %v389 = vpop.f32.mrb[0].mxu0
          %v390 = vpop.f32.mrb[0].mxu0
          %391 = vdwg.mxu0
          %v392 = vld [vmem:[%s4] sm:$0xff]
          %v393 = vld [vmem:[%s4 + $0x8] sm:$0xff]
          %v394 = vld [vmem:[%s4 + $0x10] sm:$0xff]
          %v395 = vld [vmem:[%s4 + $0x18] sm:$0xff]
          %v400 = vunpack.c.l.b16 %v392
          %v401 = vunpack.c.h.b16 %v392
          %v402 = vunpack.c.l.b16 %v393
          %v403 = vunpack.c.h.b16 %v393
          %v404 = vunpack.c.l.b16 %v394
          %v405 = vunpack.c.h.b16 %v394
          %v406 = vunpack.c.l.b16 %v395
          %v407 = vunpack.c.h.b16 %v395
          %v408 = vpack.c.b16 %v402, %v400
          %v409 = vpack.c.b16 %v403, %v401
          %v410 = vpack.c.b16 %v406, %v404
          %v411 = vpack.c.b16 %v407, %v405
          %416 = vmatprep.subr.bf16.mxu0 %v409
          %417 = vmatpush1.bf16.msra.mxu0 %v408
          %418 = vmatprep.subr.bf16.mxu0 %v411
          %419 = vmatpush1.bf16.msra.mxu0 %v410
          %420 = vmatprep.subr.bf16.mxu0 0
          %421 = vmatpush1.bf16.msra.mxu0 0
          %422 = vmatprep.subr.bf16.mxu0 0
          %423 = vmatpush1.bf16.msra.mxu0 0
          %424 = vmatprep.subr.bf16.mxu0 0
          %425 = vmatpush1.bf16.msra.mxu0 0
          %426 = vmatprep.subr.bf16.mxu0 0
          %427 = vmatpush1.bf16.msra.mxu0 0
          %428 = vmatprep.subr.bf16.mxu0 0
          %429 = vmatpush1.bf16.msra.mxu0 0
          %430 = vmatprep.subr.bf16.mxu0 0
          %431 = vmatpush1.bf16.msra.mxu0 0
          %432 = vmatprep.subr.bf16.mxu0 0
          %433 = vmatpush1.bf16.msra.mxu0 0
          %434 = vmatprep.subr.bf16.mxu0 0
          %435 = vmatpush1.bf16.msra.mxu0 0
          %436 = vmatprep.subr.bf16.mxu0 0
          %437 = vmatpush1.bf16.msra.mxu0 0
          %438 = vmatprep.subr.bf16.mxu0 0
          %439 = vmatpush1.bf16.msra.mxu0 0
          %440 = vmatprep.subr.bf16.mxu0 0
          %441 = vmatpush1.bf16.msra.mxu0 0
          %442 = vmatprep.subr.bf16.mxu0 0
          %443 = vmatpush1.bf16.msra.mxu0 0
          %444 = vmatprep.subr.bf16.mxu0 0
          %445 = vmatpush1.bf16.msra.mxu0 0
          %446 = vmatprep.subr.bf16.mxu0 0
          %447 = vmatpush1.bf16.msra.mxu0 0
          %448 = vmatprep.mubr.bf16.mxu0 0
          %449 = vmatmul.mubr.bf16.gmra.mrb[0].mxu0 %v349
          %v450 = vpop.f32.mrb[0].mxu0
          %v451 = vadd.f32 0.0, %v450
          %v452 = vpop.f32.mrb[0].mxu0
          %v453 = vadd.f32 0.0, %v452
          %v454 = vpop.f32.mrb[0].mxu0
          %v455 = vpop.f32.mrb[0].mxu0
          %456 = vdwg.mxu0
          %458 = vrot.lane.b32.xlu0 %v386, 64
          %v459 = vpop.permute.xlu0 %458
          %462 = vrot.lane.b32.xlu0 %v388, 64
          %v463 = vpop.permute.xlu0 %462
          %v465 = vcombine.low %v386, %v388
          %v466 = vcombine.high %v386, %v388
          %v468 = vunpack.c.l.s4 1983009808
          %v469 = vunpack.c.0.s8 %v468
          %v470 = vlaneseq
          %v471 = vshrl.u32 %v470, 7
          %v472 = vsub.s32 %v469, %v471
          %v473 = vrot.slane %v465, %v472
          %v475 = vunpack.c.l.s4 1983009808
          %v476 = vunpack.c.0.s8 %v475
          %v477 = vlaneseq
          %v478 = vshrl.u32 %v477, 7
          %v479 = vsub.s32 %v476, %v478
          %v480 = vrot.slane %v466, %v479
          %v481 = vcombine.low %v459, %v463
          %v482 = vcombine.high %v459, %v463
          %v484 = vunpack.c.l.s4 1983009808
          %v485 = vunpack.c.0.s8 %v484
          %v486 = vlaneseq
          %v487 = vshrl.u32 %v486, 7
          %v488 = vsub.s32 %v485, %v487
          %v489 = vrot.slane %v481, %v488
          %v491 = vunpack.c.l.s4 1983009808
          %v492 = vunpack.c.0.s8 %v491
          %v493 = vlaneseq
          %v494 = vshrl.u32 %v493, 7
          %v495 = vsub.s32 %v492, %v494
          %v496 = vrot.slane %v482, %v495
          %v497 = vcombine.low %v473, %v489
          %v498 = vcombine.high %v473, %v489
          %v500 = vunpack.c.l.s4 1934713408
          %v501 = vunpack.c.0.s8 %v500
          %v502 = vlaneseq
          %v503 = vshrl.u32 %v502, 7
          %v504 = vsub.s32 %v501, %v503
          %v505 = vrot.slane %v497, %v504
          %v507 = vunpack.c.l.s4 1934713408
          %v508 = vunpack.c.0.s8 %v507
          %v509 = vlaneseq
          %v510 = vshrl.u32 %v509, 7
          %v511 = vsub.s32 %v508, %v510
          %v512 = vrot.slane %v498, %v511
          %v513 = vcombine.low %v480, %v496
          %v514 = vcombine.high %v480, %v496
          %v516 = vunpack.c.l.s4 1934713408
          %v517 = vunpack.c.0.s8 %v516
          %v518 = vlaneseq
          %v519 = vshrl.u32 %v518, 7
          %v520 = vsub.s32 %v517, %v519
          %v521 = vrot.slane %v513, %v520
          %v523 = vunpack.c.l.s4 1934713408
          %v524 = vunpack.c.0.s8 %v523
          %v525 = vlaneseq
          %v526 = vshrl.u32 %v525, 7
          %v527 = vsub.s32 %v524, %v526
          %v528 = vrot.slane %v514, %v527
          %v529 = vcombine.high %v505, 0.0
          %v530 = vcombine.high %v512, 0.0
          %v531 = vcombine.high %v521, 0.0
          %v532 = vcombine.high %v528, 0.0
          %v533 = vcombine.low %v505, %v512
          %v535 = vunpack.c.l.s4 1983009808
          %v536 = vunpack.c.0.s8 %v535
          %v537 = vlaneseq
          %v538 = vshrl.u32 %v537, 7
          %v539 = vsub.s32 %v536, %v538
          %v540 = vrot.slane %v533, %v539
          %v541 = vcombine.low %v529, %v530
          %v543 = vunpack.c.l.s4 1983009808
          %v544 = vunpack.c.0.s8 %v543
          %v545 = vlaneseq
          %v546 = vshrl.u32 %v545, 7
          %v547 = vsub.s32 %v544, %v546
          %v548 = vrot.slane %v541, %v547
          %v549 = vcombine.low %v521, %v528
          %v551 = vunpack.c.l.s4 1983009808
          %v552 = vunpack.c.0.s8 %v551
          %v553 = vlaneseq
          %v554 = vshrl.u32 %v553, 7
          %v555 = vsub.s32 %v552, %v554
          %v556 = vrot.slane %v549, %v555
          %v557 = vcombine.low %v531, %v532
          %v559 = vunpack.c.l.s4 1983009808
          %v560 = vunpack.c.0.s8 %v559
          %v561 = vlaneseq
          %v562 = vshrl.u32 %v561, 7
          %v563 = vsub.s32 %v560, %v562
          %v564 = vrot.slane %v557, %v563
          %v565 = vcombine.low %v540, %v548
          %v566 = vcombine.high %v540, %v548
          %v568 = vunpack.c.l.s4 1934713408
          %v569 = vunpack.c.0.s8 %v568
          %v570 = vlaneseq
          %v571 = vshrl.u32 %v570, 7
          %v572 = vsub.s32 %v569, %v571
          %v573 = vrot.slane %v565, %v572
          %v575 = vunpack.c.l.s4 1934713408
          %v576 = vunpack.c.0.s8 %v575
          %v577 = vlaneseq
          %v578 = vshrl.u32 %v577, 7
          %v579 = vsub.s32 %v576, %v578
          %v580 = vrot.slane %v566, %v579
          %v581 = vcombine.low %v556, %v564
          %v582 = vcombine.high %v556, %v564
          %v584 = vunpack.c.l.s4 1934713408
          %v585 = vunpack.c.0.s8 %v584
          %v586 = vlaneseq
          %v587 = vshrl.u32 %v586, 7
          %v588 = vsub.s32 %v585, %v587
          %v589 = vrot.slane %v581, %v588
          %v591 = vunpack.c.l.s4 1934713408
          %v592 = vunpack.c.0.s8 %v591
          %v593 = vlaneseq
          %v594 = vshrl.u32 %v593, 7
          %v595 = vsub.s32 %v592, %v594
          %v596 = vrot.slane %v582, %v595
          %v597 = vcombine.low %v573, %v589
          %v598 = vcombine.high %v573, %v589
          %v599 = vcombine.low %v580, %v596
          %v600 = vcombine.high %v580, %v596
          %v601 = vpack.c.bf16 %v597, %v597
          %v602 = vpack.c.bf16 %v598, %v598
          %v603 = vpack.c.bf16 %v599, %v599
          %v604 = vpack.c.bf16 %v600, %v600
          %vm605 = vcmask 519168
          %606 = vst.msk [vmem:[#allocation2] sm:$0xf] %vm605, %v601
          %607 = vst.msk [vmem:[#allocation2 + $0x4] sm:$0xf] %vm605, %v602
          %608 = vst.msk [vmem:[#allocation2 + $0x8] sm:$0xf] %vm605, %v603
          %609 = vst.msk [vmem:[#allocation2 + $0xc] sm:$0xf] %vm605, %v604
          %611 = vrot.lane.b32.xlu0 %v451, 64
          %v612 = vpop.permute.xlu0 %611
          %615 = vrot.lane.b32.xlu0 %v453, 64
          %v616 = vpop.permute.xlu0 %615
          %v618 = vcombine.low %v451, %v453
          %v619 = vcombine.high %v451, %v453
          %v621 = vunpack.c.l.s4 1983009808
          %v622 = vunpack.c.0.s8 %v621
          %v623 = vlaneseq
          %v624 = vshrl.u32 %v623, 7
          %v625 = vsub.s32 %v622, %v624
          %v626 = vrot.slane %v618, %v625
          %v628 = vunpack.c.l.s4 1983009808
          %v629 = vunpack.c.0.s8 %v628
          %v630 = vlaneseq
          %v631 = vshrl.u32 %v630, 7
          %v632 = vsub.s32 %v629, %v631
          %v633 = vrot.slane %v619, %v632
          %v634 = vcombine.low %v612, %v616
          %v635 = vcombine.high %v612, %v616
          %v637 = vunpack.c.l.s4 1983009808
          %v638 = vunpack.c.0.s8 %v637
          %v639 = vlaneseq
          %v640 = vshrl.u32 %v639, 7
          %v641 = vsub.s32 %v638, %v640
          %v642 = vrot.slane %v634, %v641
          %v644 = vunpack.c.l.s4 1983009808
          %v645 = vunpack.c.0.s8 %v644
          %v646 = vlaneseq
          %v647 = vshrl.u32 %v646, 7
          %v648 = vsub.s32 %v645, %v647
          %v649 = vrot.slane %v635, %v648
          %v650 = vcombine.low %v626, %v642
          %v651 = vcombine.high %v626, %v642
          %v653 = vunpack.c.l.s4 1934713408
          %v654 = vunpack.c.0.s8 %v653
          %v655 = vlaneseq
          %v656 = vshrl.u32 %v655, 7
          %v657 = vsub.s32 %v654, %v656
          %v658 = vrot.slane %v650, %v657
          %v660 = vunpack.c.l.s4 1934713408
          %v661 = vunpack.c.0.s8 %v660
          %v662 = vlaneseq
          %v663 = vshrl.u32 %v662, 7
          %v664 = vsub.s32 %v661, %v663
          %v665 = vrot.slane %v651, %v664
          %v666 = vcombine.low %v633, %v649
          %v667 = vcombine.high %v633, %v649
          %v669 = vunpack.c.l.s4 1934713408
          %v670 = vunpack.c.0.s8 %v669
          %v671 = vlaneseq
          %v672 = vshrl.u32 %v671, 7
          %v673 = vsub.s32 %v670, %v672
          %v674 = vrot.slane %v666, %v673
          %v676 = vunpack.c.l.s4 1934713408
          %v677 = vunpack.c.0.s8 %v676
          %v678 = vlaneseq
          %v679 = vshrl.u32 %v678, 7
          %v680 = vsub.s32 %v677, %v679
          %v681 = vrot.slane %v667, %v680
          %v682 = vcombine.high %v658, 0.0
          %v683 = vcombine.high %v665, 0.0
          %v684 = vcombine.high %v674, 0.0
          %v685 = vcombine.high %v681, 0.0
          %v686 = vcombine.low %v658, %v665
          %v688 = vunpack.c.l.s4 1983009808
          %v689 = vunpack.c.0.s8 %v688
          %v690 = vlaneseq
          %v691 = vshrl.u32 %v690, 7
          %v692 = vsub.s32 %v689, %v691
          %v693 = vrot.slane %v686, %v692
          %v694 = vcombine.low %v682, %v683
          %v696 = vunpack.c.l.s4 1983009808
          %v697 = vunpack.c.0.s8 %v696
          %v698 = vlaneseq
          %v699 = vshrl.u32 %v698, 7
          %v700 = vsub.s32 %v697, %v699
          %v701 = vrot.slane %v694, %v700
          %v702 = vcombine.low %v674, %v681
          %v704 = vunpack.c.l.s4 1983009808
          %v705 = vunpack.c.0.s8 %v704
          %v706 = vlaneseq
          %v707 = vshrl.u32 %v706, 7
          %v708 = vsub.s32 %v705, %v707
          %v709 = vrot.slane %v702, %v708
          %v710 = vcombine.low %v684, %v685
          %v712 = vunpack.c.l.s4 1983009808
          %v713 = vunpack.c.0.s8 %v712
          %v714 = vlaneseq
          %v715 = vshrl.u32 %v714, 7
          %v716 = vsub.s32 %v713, %v715
          %v717 = vrot.slane %v710, %v716
          %v718 = vcombine.low %v693, %v701
          %v719 = vcombine.high %v693, %v701
          %v721 = vunpack.c.l.s4 1934713408
          %v722 = vunpack.c.0.s8 %v721
          %v723 = vlaneseq
          %v724 = vshrl.u32 %v723, 7
          %v725 = vsub.s32 %v722, %v724
          %v726 = vrot.slane %v718, %v725
          %v728 = vunpack.c.l.s4 1934713408
          %v729 = vunpack.c.0.s8 %v728
          %v730 = vlaneseq
          %v731 = vshrl.u32 %v730, 7
          %v732 = vsub.s32 %v729, %v731
          %v733 = vrot.slane %v719, %v732
          %v734 = vcombine.low %v709, %v717
          %v735 = vcombine.high %v709, %v717
          %v737 = vunpack.c.l.s4 1934713408
          %v738 = vunpack.c.0.s8 %v737
          %v739 = vlaneseq
          %v740 = vshrl.u32 %v739, 7
          %v741 = vsub.s32 %v738, %v740
          %v742 = vrot.slane %v734, %v741
          %v744 = vunpack.c.l.s4 1934713408
          %v745 = vunpack.c.0.s8 %v744
          %v746 = vlaneseq
          %v747 = vshrl.u32 %v746, 7
          %v748 = vsub.s32 %v745, %v747
          %v749 = vrot.slane %v735, %v748
          %v750 = vcombine.low %v726, %v742
          %v751 = vcombine.high %v726, %v742
          %v752 = vcombine.low %v733, %v749
          %v753 = vcombine.high %v733, %v749
          %v754 = vpack.c.bf16 %v750, %v750
          %v755 = vpack.c.bf16 %v751, %v751
          %v756 = vpack.c.bf16 %v752, %v752
          %v757 = vpack.c.bf16 %v753, %v753
          %758 = vst.msk [vmem:[#allocation3] sm:$0xf] %vm605, %v754
          %759 = vst.msk [vmem:[#allocation3 + $0x4] sm:$0xf] %vm605, %v755
          %760 = vst.msk [vmem:[#allocation3 + $0x8] sm:$0xf] %vm605, %v756
          %761 = vst.msk [vmem:[#allocation3 + $0xc] sm:$0xf] %vm605, %v757
        $region52: #{tpu_custom_call.1} parent=47 // pred_fallthru
          _
        %v762 = vld [vmem:[%s311] sm:$0xff]
        %v763 = vpack.c.bf16 %v762, %v762
        %v764 = vld [vmem:[%s2] sm:$0xff]
        %v765 = vld [vmem:[%s2 + $0x8] sm:$0xff]
        %v766 = vld [vmem:[%s2 + $0x10] sm:$0xff]
        %v767 = vld [vmem:[%s2 + $0x18] sm:$0xff]
        %v772 = vunpack.c.l.b16 %v764
        %v773 = vunpack.c.h.b16 %v764
        %v774 = vunpack.c.l.b16 %v765
        %v775 = vunpack.c.h.b16 %v765
        %v776 = vunpack.c.l.b16 %v766
        %v777 = vunpack.c.h.b16 %v766
        %v778 = vunpack.c.l.b16 %v767
        %v779 = vunpack.c.h.b16 %v767
        %v780 = vpack.c.b16 %v774, %v772
        %v781 = vpack.c.b16 %v775, %v773
        %v782 = vpack.c.b16 %v778, %v776
        %v783 = vpack.c.b16 %v779, %v777
        %vm788 = vcmask 261120
        %v790 = vsel %vm788, %v763, 0
        %792 = vmatprep.subr.bf16.mxu0 %v781
        %793 = vmatpush1.bf16.msra.mxu0 %v780
        %794 = vmatprep.subr.bf16.mxu0 %v783
        %795 = vmatpush1.bf16.msra.mxu0 %v782
        %796 = vmatprep.subr.bf16.mxu0 0
        %797 = vmatpush1.bf16.msra.mxu0 0
        %798 = vmatprep.subr.bf16.mxu0 0
        %799 = vmatpush1.bf16.msra.mxu0 0
        %800 = vmatprep.subr.bf16.mxu0 0
        %801 = vmatpush1.bf16.msra.mxu0 0
        %802 = vmatprep.subr.bf16.mxu0 0
        %803 = vmatpush1.bf16.msra.mxu0 0
        %804 = vmatprep.subr.bf16.mxu0 0
        %805 = vmatpush1.bf16.msra.mxu0 0
        %806 = vmatprep.subr.bf16.mxu0 0
        %807 = vmatpush1.bf16.msra.mxu0 0
        %808 = vmatprep.subr.bf16.mxu0 0
        %809 = vmatpush1.bf16.msra.mxu0 0
        %810 = vmatprep.subr.bf16.mxu0 0
        %811 = vmatpush1.bf16.msra.mxu0 0
        %812 = vmatprep.subr.bf16.mxu0 0
        %813 = vmatpush1.bf16.msra.mxu0 0
        %814 = vmatprep.subr.bf16.mxu0 0
        %815 = vmatpush1.bf16.msra.mxu0 0
        %816 = vmatprep.subr.bf16.mxu0 0
        %817 = vmatpush1.bf16.msra.mxu0 0
        %818 = vmatprep.subr.bf16.mxu0 0
        %819 = vmatpush1.bf16.msra.mxu0 0
        %820 = vmatprep.subr.bf16.mxu0 0
        %821 = vmatpush1.bf16.msra.mxu0 0
        %822 = vmatprep.subr.bf16.mxu0 0
        %823 = vmatpush1.bf16.msra.mxu0 0
        %824 = vmatprep.mubr.bf16.mxu0 0
        %825 = vmatmul.mubr.bf16.gmra.mrb[0].mxu0 %v790
        %v826 = vpop.f32.mrb[0].mxu0
        %v827 = vadd.f32 0.0, %v826
        %v828 = vpop.f32.mrb[0].mxu0
        %v829 = vadd.f32 0.0, %v828
        %v830 = vpop.f32.mrb[0].mxu0
        %v831 = vpop.f32.mrb[0].mxu0
        %832 = vdwg.mxu0
        %v833 = vmul.f32 %v827, 0.125
        %v834 = vmul.f32 %v829, 0.125
        %836 = vrot.lane.b32.xlu0 %v833, 64
        %v837 = vpop.permute.xlu0 %836
        %840 = vrot.lane.b32.xlu0 %v834, 64
        %v841 = vpop.permute.xlu0 %840
        %v843 = vcombine.low %v833, %v834
        %v844 = vcombine.high %v833, %v834
        %v846 = vunpack.c.l.s4 1983009808
        %v847 = vunpack.c.0.s8 %v846
        %v848 = vlaneseq
        %v849 = vshrl.u32 %v848, 7
        %v850 = vsub.s32 %v847, %v849
        %v851 = vrot.slane %v843, %v850
        %v853 = vunpack.c.l.s4 1983009808
        %v854 = vunpack.c.0.s8 %v853
        %v855 = vlaneseq
        %v856 = vshrl.u32 %v855, 7
        %v857 = vsub.s32 %v854, %v856
        %v858 = vrot.slane %v844, %v857
        %v859 = vcombine.low %v837, %v841
        %v860 = vcombine.high %v837, %v841
        %v862 = vunpack.c.l.s4 1983009808
        %v863 = vunpack.c.0.s8 %v862
        %v864 = vlaneseq
        %v865 = vshrl.u32 %v864, 7
        %v866 = vsub.s32 %v863, %v865
        %v867 = vrot.slane %v859, %v866
        %v869 = vunpack.c.l.s4 1983009808
        %v870 = vunpack.c.0.s8 %v869
        %v871 = vlaneseq
        %v872 = vshrl.u32 %v871, 7
        %v873 = vsub.s32 %v870, %v872
        %v874 = vrot.slane %v860, %v873
        %v875 = vcombine.low %v851, %v867
        %v876 = vcombine.high %v851, %v867
        %v878 = vunpack.c.l.s4 1934713408
        %v879 = vunpack.c.0.s8 %v878
        %v880 = vlaneseq
        %v881 = vshrl.u32 %v880, 7
        %v882 = vsub.s32 %v879, %v881
        %v883 = vrot.slane %v875, %v882
        %v885 = vunpack.c.l.s4 1934713408
        %v886 = vunpack.c.0.s8 %v885
        %v887 = vlaneseq
        %v888 = vshrl.u32 %v887, 7
        %v889 = vsub.s32 %v886, %v888
        %v890 = vrot.slane %v876, %v889
        %v891 = vcombine.low %v858, %v874
        %v892 = vcombine.high %v858, %v874
        %v894 = vunpack.c.l.s4 1934713408
        %v895 = vunpack.c.0.s8 %v894
        %v896 = vlaneseq
        %v897 = vshrl.u32 %v896, 7
        %v898 = vsub.s32 %v895, %v897
        %v899 = vrot.slane %v891, %v898
        %v901 = vunpack.c.l.s4 1934713408
        %v902 = vunpack.c.0.s8 %v901
        %v903 = vlaneseq
        %v904 = vshrl.u32 %v903, 7
        %v905 = vsub.s32 %v902, %v904
        %v906 = vrot.slane %v892, %v905
        %v907 = vcombine.high %v883, 0.0
        %v908 = vcombine.high %v890, 0.0
        %v909 = vcombine.high %v899, 0.0
        %v910 = vcombine.high %v906, 0.0
        %v911 = vcombine.low %v883, %v890
        %v913 = vunpack.c.l.s4 1983009808
        %v914 = vunpack.c.0.s8 %v913
        %v915 = vlaneseq
        %v916 = vshrl.u32 %v915, 7
        %v917 = vsub.s32 %v914, %v916
        %v918 = vrot.slane %v911, %v917
        %v919 = vcombine.low %v907, %v908
        %v921 = vunpack.c.l.s4 1983009808
        %v922 = vunpack.c.0.s8 %v921
        %v923 = vlaneseq
        %v924 = vshrl.u32 %v923, 7
        %v925 = vsub.s32 %v922, %v924
        %v926 = vrot.slane %v919, %v925
        %v927 = vcombine.low %v899, %v906
        %v929 = vunpack.c.l.s4 1983009808
        %v930 = vunpack.c.0.s8 %v929
        %v931 = vlaneseq
        %v932 = vshrl.u32 %v931, 7
        %v933 = vsub.s32 %v930, %v932
        %v934 = vrot.slane %v927, %v933
        %v935 = vcombine.low %v909, %v910
        %v937 = vunpack.c.l.s4 1983009808
        %v938 = vunpack.c.0.s8 %v937
        %v939 = vlaneseq
        %v940 = vshrl.u32 %v939, 7
        %v941 = vsub.s32 %v938, %v940
        %v942 = vrot.slane %v935, %v941
        %v943 = vcombine.low %v918, %v926
        %v944 = vcombine.high %v918, %v926
        %v946 = vunpack.c.l.s4 1934713408
        %v947 = vunpack.c.0.s8 %v946
        %v948 = vlaneseq
        %v949 = vshrl.u32 %v948, 7
        %v950 = vsub.s32 %v947, %v949
        %v951 = vrot.slane %v943, %v950
        %v953 = vunpack.c.l.s4 1934713408
        %v954 = vunpack.c.0.s8 %v953
        %v955 = vlaneseq
        %v956 = vshrl.u32 %v955, 7
        %v957 = vsub.s32 %v954, %v956
        %v958 = vrot.slane %v944, %v957
        %v959 = vcombine.low %v934, %v942
        %v960 = vcombine.high %v934, %v942
        %v962 = vunpack.c.l.s4 1934713408
        %v963 = vunpack.c.0.s8 %v962
        %v964 = vlaneseq
        %v965 = vshrl.u32 %v964, 7
        %v966 = vsub.s32 %v963, %v965
        %v967 = vrot.slane %v959, %v966
        %v969 = vunpack.c.l.s4 1934713408
        %v970 = vunpack.c.0.s8 %v969
        %v971 = vlaneseq
        %v972 = vshrl.u32 %v971, 7
        %v973 = vsub.s32 %v970, %v972
        %v974 = vrot.slane %v960, %v973
        %v975 = vcombine.low %v951, %v967
        %v976 = vcombine.high %v951, %v967
        %v977 = vcombine.low %v958, %v974
        %v978 = vcombine.high %v958, %v974
        %v979 = vpack.c.bf16 %v975, %v975
        %v980 = vpack.c.bf16 %v976, %v976
        %v981 = vpack.c.bf16 %v977, %v977
        %v982 = vpack.c.bf16 %v978, %v978
        %v983 = vld [vmem:[#allocation2] sm:$0xf]
        %v984 = vld [vmem:[#allocation2 + $0x4] sm:$0xf]
        %v985 = vld [vmem:[#allocation2 + $0x8] sm:$0xf]
        %v986 = vld [vmem:[#allocation2 + $0xc] sm:$0xf]
        %v987 = vld [vmem:[#allocation3] sm:$0xf]
        %v988 = vld [vmem:[#allocation3 + $0x4] sm:$0xf]
        %v989 = vld [vmem:[#allocation3 + $0x8] sm:$0xf]
        %v990 = vld [vmem:[#allocation3 + $0xc] sm:$0xf]
        %vm991 = vcmask 523264
        %v993 = vsel %vm991, %v979, 0
        %v996 = vsel %vm991, %v983, 0
        %998 = vmatprep.subr.bf16.mxu0 0
        %999 = vmatpush1.bf16.xpose.msra.mxu0 %v996
        %1000 = vmatprep.subr.bf16.mxu0 0
        %1001 = vmatpush1.bf16.xpose.msra.mxu0 0
        %1002 = vmatprep.subr.bf16.mxu0 0
        %1003 = vmatpush1.bf16.xpose.msra.mxu0 0
        %1004 = vmatprep.subr.bf16.mxu0 0
        %1005 = vmatpush1.bf16.xpose.msra.mxu0 0
        %1006 = vmatprep.subr.bf16.mxu0 0
        %1007 = vmatpush1.bf16.xpose.msra.mxu0 0
        %1008 = vmatprep.subr.bf16.mxu0 0
        %1009 = vmatpush1.bf16.xpose.msra.mxu0 0
        %1010 = vmatprep.subr.bf16.mxu0 0
        %1011 = vmatpush1.bf16.xpose.msra.mxu0 0
        %1012 = vmatprep.subr.bf16.mxu0 0
        %1013 = vmatpush1.bf16.xpose.msra.mxu0 0
        %1014 = vmatprep.subr.bf16.mxu0 0
        %1015 = vmatpush1.bf16.xpose.msra.mxu0 0
        %1016 = vmatprep.subr.bf16.mxu0 0
        %1017 = vmatpush1.bf16.xpose.msra.mxu0 0
        %1018 = vmatprep.subr.bf16.mxu0 0
        %1019 = vmatpush1.bf16.xpose.msra.mxu0 0
        %1020 = vmatprep.subr.bf16.mxu0 0
        %1021 = vmatpush1.bf16.xpose.msra.mxu0 0
        %1022 = vmatprep.subr.bf16.mxu0 0
        %1023 = vmatpush1.bf16.xpose.msra.mxu0 0
        %1024 = vmatprep.subr.bf16.mxu0 0
        %1025 = vmatpush1.bf16.xpose.msra.mxu0 0
        %1026 = vmatprep.subr.bf16.mxu0 0
        %1027 = vmatpush1.bf16.xpose.msra.mxu0 0
        %1028 = vmatprep.subr.bf16.mxu0 0
        %1029 = vmatpush1.bf16.xpose.msra.mxu0 0
        %1030 = vmatprep.mubr.bf16.mxu0 0
        %1031 = vmatmul.mubr.bf16.gmra.mrb[0].mxu0 %v993
        %v1032 = vpop.f32.mrb[0].mxu0
        %v1033 = vadd.f32 0.0, %v1032
        %v1034 = vpop.f32.mrb[0].mxu0
        %v1035 = vpop.f32.mrb[0].mxu0
        %v1036 = vpop.f32.mrb[0].mxu0
        %1037 = vdwg.mxu0
        %v1039 = vsel %vm991, %v980, 0
        %v1042 = vsel %vm991, %v984, 0
        %1044 = vmatprep.subr.bf16.mxu0 0
        %1045 = vmatpush1.bf16.xpose.msra.mxu0 %v1042
        %1046 = vmatprep.subr.bf16.mxu0 0
        %1047 = vmatpush1.bf16.xpose.msra.mxu0 0
        %1048 = vmatprep.subr.bf16.mxu0 0
        %1049 = vmatpush1.bf16.xpose.msra.mxu0 0
        %1050 = vmatprep.subr.bf16.mxu0 0
        %1051 = vmatpush1.bf16.xpose.msra.mxu0 0
        %1052 = vmatprep.subr.bf16.mxu0 0
        %1053 = vmatpush1.bf16.xpose.msra.mxu0 0
        %1054 = vmatprep.subr.bf16.mxu0 0
        %1055 = vmatpush1.bf16.xpose.msra.mxu0 0
        %1056 = vmatprep.subr.bf16.mxu0 0
        %1057 = vmatpush1.bf16.xpose.msra.mxu0 0
        %1058 = vmatprep.subr.bf16.mxu0 0
        %1059 = vmatpush1.bf16.xpose.msra.mxu0 0
        %1060 = vmatprep.subr.bf16.mxu0 0
        %1061 = vmatpush1.bf16.xpose.msra.mxu0 0
        %1062 = vmatprep.subr.bf16.mxu0 0
        %1063 = vmatpush1.bf16.xpose.msra.mxu0 0
        %1064 = vmatprep.subr.bf16.mxu0 0
        %1065 = vmatpush1.bf16.xpose.msra.mxu0 0
        %1066 = vmatprep.subr.bf16.mxu0 0
        %1067 = vmatpush1.bf16.xpose.msra.mxu0 0
        %1068 = vmatprep.subr.bf16.mxu0 0
        %1069 = vmatpush1.bf16.xpose.msra.mxu0 0
        %1070 = vmatprep.subr.bf16.mxu0 0
        %1071 = vmatpush1.bf16.xpose.msra.mxu0 0
        %1072 = vmatprep.subr.bf16.mxu0 0
        %1073 = vmatpush1.bf16.xpose.msra.mxu0 0
        %1074 = vmatprep.subr.bf16.mxu0 0
        %1075 = vmatpush1.bf16.xpose.msra.mxu0 0
        %1076 = vmatprep.mubr.bf16.mxu0 0
        %1077 = vmatmul.mubr.bf16.gmra.mrb[0].mxu0 %v1039
        %v1078 = vpop.f32.mrb[0].mxu0
        %v1079 = vadd.f32 0.0, %v1078
        %v1080 = vpop.f32.mrb[0].mxu0
        %v1081 = vpop.f32.mrb[0].mxu0
        %v1082 = vpop.f32.mrb[0].mxu0
        %1083 = vdwg.mxu0
        %v1085 = vsel %vm991, %v981, 0
        %v1088 = vsel %vm991, %v985, 0
        %1090 = vmatprep.subr.bf16.mxu0 0
        %1091 = vmatpush1.bf16.xpose.msra.mxu0 %v1088
        %1092 = vmatprep.subr.bf16.mxu0 0
        %1093 = vmatpush1.bf16.xpose.msra.mxu0 0
        %1094 = vmatprep.subr.bf16.mxu0 0
        %1095 = vmatpush1.bf16.xpose.msra.mxu0 0
        %1096 = vmatprep.subr.bf16.mxu0 0
        %1097 = vmatpush1.bf16.xpose.msra.mxu0 0
        %1098 = vmatprep.subr.bf16.mxu0 0
        %1099 = vmatpush1.bf16.xpose.msra.mxu0 0
        %1100 = vmatprep.subr.bf16.mxu0 0
        %1101 = vmatpush1.bf16.xpose.msra.mxu0 0
        %1102 = vmatprep.subr.bf16.mxu0 0
        %1103 = vmatpush1.bf16.xpose.msra.mxu0 0
        %1104 = vmatprep.subr.bf16.mxu0 0
        %1105 = vmatpush1.bf16.xpose.msra.mxu0 0
        %1106 = vmatprep.subr.bf16.mxu0 0
        %1107 = vmatpush1.bf16.xpose.msra.mxu0 0
        %1108 = vmatprep.subr.bf16.mxu0 0
        %1109 = vmatpush1.bf16.xpose.msra.mxu0 0
        %1110 = vmatprep.subr.bf16.mxu0 0
        %1111 = vmatpush1.bf16.xpose.msra.mxu0 0
        %1112 = vmatprep.subr.bf16.mxu0 0
        %1113 = vmatpush1.bf16.xpose.msra.mxu0 0
        %1114 = vmatprep.subr.bf16.mxu0 0
        %1115 = vmatpush1.bf16.xpose.msra.mxu0 0
        %1116 = vmatprep.subr.bf16.mxu0 0
        %1117 = vmatpush1.bf16.xpose.msra.mxu0 0
        %1118 = vmatprep.subr.bf16.mxu0 0
        %1119 = vmatpush1.bf16.xpose.msra.mxu0 0
        %1120 = vmatprep.subr.bf16.mxu0 0
        %1121 = vmatpush1.bf16.xpose.msra.mxu0 0
        %1122 = vmatprep.mubr.bf16.mxu0 0
        %1123 = vmatmul.mubr.bf16.gmra.mrb[0].mxu0 %v1085
        %v1124 = vpop.f32.mrb[0].mxu0
        %v1125 = vadd.f32 0.0, %v1124
        %v1126 = vpop.f32.mrb[0].mxu0
        %v1127 = vpop.f32.mrb[0].mxu0
        %v1128 = vpop.f32.mrb[0].mxu0
        %1129 = vdwg.mxu0
        %v1131 = vsel %vm991, %v982, 0
        %v1134 = vsel %vm991, %v986, 0
        %1136 = vmatprep.subr.bf16.mxu0 0
        %1137 = vmatpush1.bf16.xpose.msra.mxu0 %v1134
        %1138 = vmatprep.subr.bf16.mxu0 0
        %1139 = vmatpush1.bf16.xpose.msra.mxu0 0
        %1140 = vmatprep.subr.bf16.mxu0 0
        %1141 = vmatpush1.bf16.xpose.msra.mxu0 0
        %1142 = vmatprep.subr.bf16.mxu0 0
        %1143 = vmatpush1.bf16.xpose.msra.mxu0 0
        %1144 = vmatprep.subr.bf16.mxu0 0
        %1145 = vmatpush1.bf16.xpose.msra.mxu0 0
        %1146 = vmatprep.subr.bf16.mxu0 0
        %1147 = vmatpush1.bf16.xpose.msra.mxu0 0
        %1148 = vmatprep.subr.bf16.mxu0 0
        %1149 = vmatpush1.bf16.xpose.msra.mxu0 0
        %1150 = vmatprep.subr.bf16.mxu0 0
        %1151 = vmatpush1.bf16.xpose.msra.mxu0 0
        %1152 = vmatprep.subr.bf16.mxu0 0
        %1153 = vmatpush1.bf16.xpose.msra.mxu0 0
        %1154 = vmatprep.subr.bf16.mxu0 0
        %1155 = vmatpush1.bf16.xpose.msra.mxu0 0
        %1156 = vmatprep.subr.bf16.mxu0 0
        %1157 = vmatpush1.bf16.xpose.msra.mxu0 0
        %1158 = vmatprep.subr.bf16.mxu0 0
        %1159 = vmatpush1.bf16.xpose.msra.mxu0 0
        %1160 = vmatprep.subr.bf16.mxu0 0
        %1161 = vmatpush1.bf16.xpose.msra.mxu0 0
        %1162 = vmatprep.subr.bf16.mxu0 0
        %1163 = vmatpush1.bf16.xpose.msra.mxu0 0
        %1164 = vmatprep.subr.bf16.mxu0 0
        %1165 = vmatpush1.bf16.xpose.msra.mxu0 0
        %1166 = vmatprep.subr.bf16.mxu0 0
        %1167 = vmatpush1.bf16.xpose.msra.mxu0 0
        %1168 = vmatprep.mubr.bf16.mxu0 0
        %1169 = vmatmul.mubr.bf16.gmra.mrb[0].mxu0 %v1131
        %v1170 = vpop.f32.mrb[0].mxu0
        %v1171 = vadd.f32 0.0, %v1170
        %v1172 = vpop.f32.mrb[0].mxu0
        %v1173 = vpop.f32.mrb[0].mxu0
        %v1174 = vpop.f32.mrb[0].mxu0
        %1175 = vdwg.mxu0
        %vm1176 = vcmask 64512
        %v1177 = vsel %vm1176, %v1033, -inf
        %1178 = vmax.xlane.f32.xlu0 %v1177
        %v1179 = vpop.xlane.xlu0 %1178
        %v1180 = vsel %vm1176, %v1079, -inf
        %1181 = vmax.xlane.f32.xlu0 %v1180
        %v1182 = vpop.xlane.xlu0 %1181
        %v1183 = vsel %vm1176, %v1125, -inf
        %1184 = vmax.xlane.f32.xlu0 %v1183
        %v1185 = vpop.xlane.xlu0 %1184
        %v1186 = vsel %vm1176, %v1171, -inf
        %1187 = vmax.xlane.f32.xlu0 %v1186
        %v1188 = vpop.xlane.xlu0 %1187
        %v1189 = vsub.f32 %v1033, %v1179
        %v1190 = vsub.f32 %v1079, %v1182
        %v1191 = vsub.f32 %v1125, %v1185
        %v1192 = vsub.f32 %v1171, %v1188
        %v1193 = vmul.f32 %v1189, 1.442695
        %v1194 = vpow.pop %v1193
        %v1195 = vmul.f32 %v1190, 1.442695
        %v1196 = vpow.pop %v1195
        %v1197 = vmul.f32 %v1191, 1.442695
        %v1198 = vpow.pop %v1197
        %v1199 = vmul.f32 %v1192, 1.442695
        %v1200 = vpow.pop %v1199
        %v1201 = vsel %vm1176, %v1194, 0.0
        %1202 = vadd.xlane.f32.xlu0 %v1201
        %v1203 = vpop.xlane.xlu0 %1202
        %v1204 = vsel %vm1176, %v1196, 0.0
        %1205 = vadd.xlane.f32.xlu0 %v1204
        %v1206 = vpop.xlane.xlu0 %1205
        %v1207 = vsel %vm1176, %v1198, 0.0
        %1208 = vadd.xlane.f32.xlu0 %v1207
        %v1209 = vpop.xlane.xlu0 %1208
        %v1210 = vsel %vm1176, %v1200, 0.0
        %1211 = vadd.xlane.f32.xlu0 %v1210
        %v1212 = vpop.xlane.xlu0 %1211
        %v1213 = vpack.c.bf16 %v1194, %v1194
        %v1214 = vpack.c.bf16 %v1196, %v1196
        %v1215 = vpack.c.bf16 %v1198, %v1198
        %v1216 = vpack.c.bf16 %v1200, %v1200
        %v1218 = vsel %vm1176, %v1213, 0
        %vm1220 = vcmask 1043456
        %v1222 = vsel %vm1220, %v987, 0
        %1224 = vmatprep.subr.bf16.mxu0 0
        %1225 = vmatpush1.bf16.msra.mxu0 %v1222
        %1226 = vmatprep.subr.bf16.mxu0 0
        %1227 = vmatpush1.bf16.msra.mxu0 0
        %1228 = vmatprep.subr.bf16.mxu0 0
        %1229 = vmatpush1.bf16.msra.mxu0 0
        %1230 = vmatprep.subr.bf16.mxu0 0
        %1231 = vmatpush1.bf16.msra.mxu0 0
        %1232 = vmatprep.subr.bf16.mxu0 0
        %1233 = vmatpush1.bf16.msra.mxu0 0
        %1234 = vmatprep.subr.bf16.mxu0 0
        %1235 = vmatpush1.bf16.msra.mxu0 0
        %1236 = vmatprep.subr.bf16.mxu0 0
        %1237 = vmatpush1.bf16.msra.mxu0 0
        %1238 = vmatprep.subr.bf16.mxu0 0
        %1239 = vmatpush1.bf16.msra.mxu0 0
        %1240 = vmatprep.subr.bf16.mxu0 0
        %1241 = vmatpush1.bf16.msra.mxu0 0
        %1242 = vmatprep.subr.bf16.mxu0 0
        %1243 = vmatpush1.bf16.msra.mxu0 0
        %1244 = vmatprep.subr.bf16.mxu0 0
        %1245 = vmatpush1.bf16.msra.mxu0 0
        %1246 = vmatprep.subr.bf16.mxu0 0
        %1247 = vmatpush1.bf16.msra.mxu0 0
        %1248 = vmatprep.subr.bf16.mxu0 0
        %1249 = vmatpush1.bf16.msra.mxu0 0
        %1250 = vmatprep.subr.bf16.mxu0 0
        %1251 = vmatpush1.bf16.msra.mxu0 0
        %1252 = vmatprep.subr.bf16.mxu0 0
        %1253 = vmatpush1.bf16.msra.mxu0 0
        %1254 = vmatprep.subr.bf16.mxu0 0
        %1255 = vmatpush1.bf16.msra.mxu0 0
        %1256 = vmatprep.mubr.bf16.mxu0 0
        %1257 = vmatmul.mubr.bf16.gmra.mrb[0].mxu0 %v1218
        %v1258 = vpop.f32.mrb[0].mxu0
        %v1259 = vadd.f32 0.0, %v1258
        %v1260 = vpop.f32.mrb[0].mxu0
        %v1261 = vpop.f32.mrb[0].mxu0
        %v1262 = vpop.f32.mrb[0].mxu0
        %1263 = vdwg.mxu0
        %v1265 = vsel %vm1176, %v1214, 0
        %v1268 = vsel %vm1220, %v988, 0
        %1270 = vmatprep.subr.bf16.mxu0 0
        %1271 = vmatpush1.bf16.msra.mxu0 %v1268
        %1272 = vmatprep.subr.bf16.mxu0 0
        %1273 = vmatpush1.bf16.msra.mxu0 0
        %1274 = vmatprep.subr.bf16.mxu0 0
        %1275 = vmatpush1.bf16.msra.mxu0 0
        %1276 = vmatprep.subr.bf16.mxu0 0
        %1277 = vmatpush1.bf16.msra.mxu0 0
        %1278 = vmatprep.subr.bf16.mxu0 0
        %1279 = vmatpush1.bf16.msra.mxu0 0
        %1280 = vmatprep.subr.bf16.mxu0 0
        %1281 = vmatpush1.bf16.msra.mxu0 0
        %1282 = vmatprep.subr.bf16.mxu0 0
        %1283 = vmatpush1.bf16.msra.mxu0 0
        %1284 = vmatprep.subr.bf16.mxu0 0
        %1285 = vmatpush1.bf16.msra.mxu0 0
        %1286 = vmatprep.subr.bf16.mxu0 0
        %1287 = vmatpush1.bf16.msra.mxu0 0
        %1288 = vmatprep.subr.bf16.mxu0 0
        %1289 = vmatpush1.bf16.msra.mxu0 0
        %1290 = vmatprep.subr.bf16.mxu0 0
        %1291 = vmatpush1.bf16.msra.mxu0 0
        %1292 = vmatprep.subr.bf16.mxu0 0
        %1293 = vmatpush1.bf16.msra.mxu0 0
        %1294 = vmatprep.subr.bf16.mxu0 0
        %1295 = vmatpush1.bf16.msra.mxu0 0
        %1296 = vmatprep.subr.bf16.mxu0 0
        %1297 = vmatpush1.bf16.msra.mxu0 0
        %1298 = vmatprep.subr.bf16.mxu0 0
        %1299 = vmatpush1.bf16.msra.mxu0 0
        %1300 = vmatprep.subr.bf16.mxu0 0
        %1301 = vmatpush1.bf16.msra.mxu0 0
        %1302 = vmatprep.mubr.bf16.mxu0 0
        %1303 = vmatmul.mubr.bf16.gmra.mrb[0].mxu0 %v1265
        %v1304 = vpop.f32.mrb[0].mxu0
        %v1305 = vadd.f32 0.0, %v1304
        %v1306 = vpop.f32.mrb[0].mxu0
        %v1307 = vpop.f32.mrb[0].mxu0
        %v1308 = vpop.f32.mrb[0].mxu0
        %1309 = vdwg.mxu0
        %v1311 = vsel %vm1176, %v1215, 0
        %v1314 = vsel %vm1220, %v989, 0
        %1316 = vmatprep.subr.bf16.mxu0 0
        %1317 = vmatpush1.bf16.msra.mxu0 %v1314
        %1318 = vmatprep.subr.bf16.mxu0 0
        %1319 = vmatpush1.bf16.msra.mxu0 0
        %1320 = vmatprep.subr.bf16.mxu0 0
        %1321 = vmatpush1.bf16.msra.mxu0 0
        %1322 = vmatprep.subr.bf16.mxu0 0
        %1323 = vmatpush1.bf16.msra.mxu0 0
        %1324 = vmatprep.subr.bf16.mxu0 0
        %1325 = vmatpush1.bf16.msra.mxu0 0
        %1326 = vmatprep.subr.bf16.mxu0 0
        %1327 = vmatpush1.bf16.msra.mxu0 0
        %1328 = vmatprep.subr.bf16.mxu0 0
        %1329 = vmatpush1.bf16.msra.mxu0 0
        %1330 = vmatprep.subr.bf16.mxu0 0
        %1331 = vmatpush1.bf16.msra.mxu0 0
        %1332 = vmatprep.subr.bf16.mxu0 0
        %1333 = vmatpush1.bf16.msra.mxu0 0
        %1334 = vmatprep.subr.bf16.mxu0 0
        %1335 = vmatpush1.bf16.msra.mxu0 0
        %1336 = vmatprep.subr.bf16.mxu0 0
        %1337 = vmatpush1.bf16.msra.mxu0 0
        %1338 = vmatprep.subr.bf16.mxu0 0
        %1339 = vmatpush1.bf16.msra.mxu0 0
        %1340 = vmatprep.subr.bf16.mxu0 0
        %1341 = vmatpush1.bf16.msra.mxu0 0
        %1342 = vmatprep.subr.bf16.mxu0 0
        %1343 = vmatpush1.bf16.msra.mxu0 0
        %1344 = vmatprep.subr.bf16.mxu0 0
        %1345 = vmatpush1.bf16.msra.mxu0 0
        %1346 = vmatprep.subr.bf16.mxu0 0
        %1347 = vmatpush1.bf16.msra.mxu0 0
        %1348 = vmatprep.mubr.bf16.mxu0 0
        %1349 = vmatmul.mubr.bf16.gmra.mrb[0].mxu0 %v1311
        %v1350 = vpop.f32.mrb[0].mxu0
        %v1351 = vadd.f32 0.0, %v1350
        %v1352 = vpop.f32.mrb[0].mxu0
        %v1353 = vpop.f32.mrb[0].mxu0
        %v1354 = vpop.f32.mrb[0].mxu0
        %1355 = vdwg.mxu0
        %v1357 = vsel %vm1176, %v1216, 0
        %v1360 = vsel %vm1220, %v990, 0
        %1362 = vmatprep.subr.bf16.mxu0 0
        %1363 = vmatpush1.bf16.msra.mxu0 %v1360
        %1364 = vmatprep.subr.bf16.mxu0 0
        %1365 = vmatpush1.bf16.msra.mxu0 0
        %1366 = vmatprep.subr.bf16.mxu0 0
        %1367 = vmatpush1.bf16.msra.mxu0 0
        %1368 = vmatprep.subr.bf16.mxu0 0
        %1369 = vmatpush1.bf16.msra.mxu0 0
        %1370 = vmatprep.subr.bf16.mxu0 0
        %1371 = vmatpush1.bf16.msra.mxu0 0
        %1372 = vmatprep.subr.bf16.mxu0 0
        %1373 = vmatpush1.bf16.msra.mxu0 0
        %1374 = vmatprep.subr.bf16.mxu0 0
        %1375 = vmatpush1.bf16.msra.mxu0 0
        %1376 = vmatprep.subr.bf16.mxu0 0
        %1377 = vmatpush1.bf16.msra.mxu0 0
        %1378 = vmatprep.subr.bf16.mxu0 0
        %1379 = vmatpush1.bf16.msra.mxu0 0
        %1380 = vmatprep.subr.bf16.mxu0 0
        %1381 = vmatpush1.bf16.msra.mxu0 0
        %1382 = vmatprep.subr.bf16.mxu0 0
        %1383 = vmatpush1.bf16.msra.mxu0 0
        %1384 = vmatprep.subr.bf16.mxu0 0
        %1385 = vmatpush1.bf16.msra.mxu0 0
        %1386 = vmatprep.subr.bf16.mxu0 0
        %1387 = vmatpush1.bf16.msra.mxu0 0
        %1388 = vmatprep.subr.bf16.mxu0 0
        %1389 = vmatpush1.bf16.msra.mxu0 0
        %1390 = vmatprep.subr.bf16.mxu0 0
        %1391 = vmatpush1.bf16.msra.mxu0 0
        %1392 = vmatprep.subr.bf16.mxu0 0
        %1393 = vmatpush1.bf16.msra.mxu0 0
        %1394 = vmatprep.mubr.bf16.mxu0 0
        %1395 = vmatmul.mubr.bf16.gmra.mrb[0].mxu0 %v1357
        %v1396 = vpop.f32.mrb[0].mxu0
        %v1397 = vadd.f32 0.0, %v1396
        %v1398 = vpop.f32.mrb[0].mxu0
        %v1399 = vpop.f32.mrb[0].mxu0
        %v1400 = vpop.f32.mrb[0].mxu0
        %1401 = vdwg.mxu0
        %v1402 = vrcp.pop %v1203
        %v1403 = vmul.f32 1.0, %v1402
        %v1404 = vrcp.pop %v1206
        %v1405 = vmul.f32 1.0, %v1404
        %v1406 = vrcp.pop %v1209
        %v1407 = vmul.f32 1.0, %v1406
        %v1408 = vrcp.pop %v1212
        %v1409 = vmul.f32 1.0, %v1408
        %v1410 = vmul.f32 %v1259, %v1403
        %v1411 = vmul.f32 %v1305, %v1405
        %v1412 = vmul.f32 %v1351, %v1407
        %v1413 = vmul.f32 %v1397, %v1409
        %v1414 = vpack.c.bf16 %v1410, %v1410
        %v1415 = vpack.c.bf16 %v1411, %v1411
        %v1416 = vpack.c.bf16 %v1412, %v1412
        %v1417 = vpack.c.bf16 %v1413, %v1413
        %v1418 = vld [vmem:[%s5] sm:$0xf]
        %v1419 = vld [vmem:[%s5 + $0x4] sm:$0xf]
        %v1420 = vld [vmem:[%s5 + $0x8] sm:$0xf]
        %v1421 = vld [vmem:[%s5 + $0xc] sm:$0xf]
        %v1422 = vld [vmem:[%s5 + $0x10] sm:$0xf]
        %v1423 = vld [vmem:[%s5 + $0x14] sm:$0xf]
        %v1424 = vld [vmem:[%s5 + $0x18] sm:$0xf]
        %v1425 = vld [vmem:[%s5 + $0x1c] sm:$0xf]
        %v1426 = vld [vmem:[%s5 + $0x20] sm:$0xf]
        %v1427 = vld [vmem:[%s5 + $0x24] sm:$0xf]
        %v1428 = vld [vmem:[%s5 + $0x28] sm:$0xf]
        %v1429 = vld [vmem:[%s5 + $0x2c] sm:$0xf]
        %v1430 = vld [vmem:[%s5 + $0x30] sm:$0xf]
        %v1431 = vld [vmem:[%s5 + $0x34] sm:$0xf]
        %v1432 = vld [vmem:[%s5 + $0x38] sm:$0xf]
        %v1433 = vld [vmem:[%s5 + $0x3c] sm:$0xf]
        %v1434 = vld [vmem:[%s5 + $0x40] sm:$0xf]
        %v1435 = vld [vmem:[%s5 + $0x44] sm:$0xf]
        %v1436 = vld [vmem:[%s5 + $0x48] sm:$0xf]
        %v1437 = vld [vmem:[%s5 + $0x4c] sm:$0xf]
        %v1438 = vld [vmem:[%s5 + $0x50] sm:$0xf]
        %v1439 = vld [vmem:[%s5 + $0x54] sm:$0xf]
        %v1440 = vld [vmem:[%s5 + $0x58] sm:$0xf]
        %v1441 = vld [vmem:[%s5 + $0x5c] sm:$0xf]
        %v1442 = vld [vmem:[%s5 + $0x60] sm:$0xf]
        %v1443 = vld [vmem:[%s5 + $0x64] sm:$0xf]
        %v1444 = vld [vmem:[%s5 + $0x68] sm:$0xf]
        %v1445 = vld [vmem:[%s5 + $0x6c] sm:$0xf]
        %v1446 = vld [vmem:[%s5 + $0x70] sm:$0xf]
        %v1447 = vld [vmem:[%s5 + $0x74] sm:$0xf]
        %v1448 = vld [vmem:[%s5 + $0x78] sm:$0xf]
        %v1449 = vld [vmem:[%s5 + $0x7c] sm:$0xf]
        %v1458 = vunpack.c.l.b16 %v1418
        %v1459 = vunpack.c.l.b16 %v1419
        %v1460 = vunpack.c.l.b16 %v1420
        %v1461 = vunpack.c.l.b16 %v1421
        %v1462 = vunpack.c.l.b16 %v1422
        %v1463 = vunpack.c.l.b16 %v1423
        %v1464 = vunpack.c.l.b16 %v1424
        %v1465 = vunpack.c.l.b16 %v1425
        %v1466 = vpack.c.b16 %v1459, %v1458
        %v1467 = vpack.c.b16 %v1461, %v1460
        %v1468 = vpack.c.b16 %v1463, %v1462
        %v1469 = vpack.c.b16 %v1465, %v1464
        %v1475 = vsel %vm991, %v1414, 0
        %1477 = vmatprep.subr.bf16.mxu0 0
        %1478 = vmatpush1.bf16.msra.mxu0 %v1466
        %1479 = vmatprep.subr.bf16.mxu0 0
        %1480 = vmatpush1.bf16.msra.mxu0 %v1467
        %1481 = vmatprep.subr.bf16.mxu0 0
        %1482 = vmatpush1.bf16.msra.mxu0 %v1468
        %1483 = vmatprep.subr.bf16.mxu0 0
        %1484 = vmatpush1.bf16.msra.mxu0 %v1469
        %1485 = vmatprep.subr.bf16.mxu0 0
        %1486 = vmatpush1.bf16.msra.mxu0 0
        %1487 = vmatprep.subr.bf16.mxu0 0
        %1488 = vmatpush1.bf16.msra.mxu0 0
        %1489 = vmatprep.subr.bf16.mxu0 0
        %1490 = vmatpush1.bf16.msra.mxu0 0
        %1491 = vmatprep.subr.bf16.mxu0 0
        %1492 = vmatpush1.bf16.msra.mxu0 0
        %1493 = vmatprep.subr.bf16.mxu0 0
        %1494 = vmatpush1.bf16.msra.mxu0 0
        %1495 = vmatprep.subr.bf16.mxu0 0
        %1496 = vmatpush1.bf16.msra.mxu0 0
        %1497 = vmatprep.subr.bf16.mxu0 0
        %1498 = vmatpush1.bf16.msra.mxu0 0
        %1499 = vmatprep.subr.bf16.mxu0 0
        %1500 = vmatpush1.bf16.msra.mxu0 0
        %1501 = vmatprep.subr.bf16.mxu0 0
        %1502 = vmatpush1.bf16.msra.mxu0 0
        %1503 = vmatprep.subr.bf16.mxu0 0
        %1504 = vmatpush1.bf16.msra.mxu0 0
        %1505 = vmatprep.subr.bf16.mxu0 0
        %1506 = vmatpush1.bf16.msra.mxu0 0
        %1507 = vmatprep.subr.bf16.mxu0 0
        %1508 = vmatpush1.bf16.msra.mxu0 0
        %1509 = vmatprep.mubr.bf16.mxu0 0
        %1510 = vmatmul.mubr.bf16.gmra.mrb[0].mxu0 %v1475
        %v1511 = vpop.f32.mrb[0].mxu0
        %v1512 = vadd.f32 0.0, %v1511
        %v1513 = vpop.f32.mrb[0].mxu0
        %v1514 = vpop.f32.mrb[0].mxu0
        %v1515 = vpop.f32.mrb[0].mxu0
        %1516 = vdwg.mxu0
        %v1525 = vunpack.c.l.b16 %v1426
        %v1526 = vunpack.c.l.b16 %v1427
        %v1527 = vunpack.c.l.b16 %v1428
        %v1528 = vunpack.c.l.b16 %v1429
        %v1529 = vunpack.c.l.b16 %v1430
        %v1530 = vunpack.c.l.b16 %v1431
        %v1531 = vunpack.c.l.b16 %v1432
        %v1532 = vunpack.c.l.b16 %v1433
        %v1533 = vpack.c.b16 %v1526, %v1525
        %v1534 = vpack.c.b16 %v1528, %v1527
        %v1535 = vpack.c.b16 %v1530, %v1529
        %v1536 = vpack.c.b16 %v1532, %v1531
        %v1542 = vsel %vm991, %v1415, 0
        %1544 = vmatprep.subr.bf16.mxu0 0
        %1545 = vmatpush1.bf16.msra.mxu0 %v1533
        %1546 = vmatprep.subr.bf16.mxu0 0
        %1547 = vmatpush1.bf16.msra.mxu0 %v1534
        %1548 = vmatprep.subr.bf16.mxu0 0
        %1549 = vmatpush1.bf16.msra.mxu0 %v1535
        %1550 = vmatprep.subr.bf16.mxu0 0
        %1551 = vmatpush1.bf16.msra.mxu0 %v1536
        %1552 = vmatprep.subr.bf16.mxu0 0
        %1553 = vmatpush1.bf16.msra.mxu0 0
        %1554 = vmatprep.subr.bf16.mxu0 0
        %1555 = vmatpush1.bf16.msra.mxu0 0
        %1556 = vmatprep.subr.bf16.mxu0 0
        %1557 = vmatpush1.bf16.msra.mxu0 0
        %1558 = vmatprep.subr.bf16.mxu0 0
        %1559 = vmatpush1.bf16.msra.mxu0 0
        %1560 = vmatprep.subr.bf16.mxu0 0
        %1561 = vmatpush1.bf16.msra.mxu0 0
        %1562 = vmatprep.subr.bf16.mxu0 0
        %1563 = vmatpush1.bf16.msra.mxu0 0
        %1564 = vmatprep.subr.bf16.mxu0 0
        %1565 = vmatpush1.bf16.msra.mxu0 0
        %1566 = vmatprep.subr.bf16.mxu0 0
        %1567 = vmatpush1.bf16.msra.mxu0 0
        %1568 = vmatprep.subr.bf16.mxu0 0
        %1569 = vmatpush1.bf16.msra.mxu0 0
        %1570 = vmatprep.subr.bf16.mxu0 0
        %1571 = vmatpush1.bf16.msra.mxu0 0
        %1572 = vmatprep.subr.bf16.mxu0 0
        %1573 = vmatpush1.bf16.msra.mxu0 0
        %1574 = vmatprep.subr.bf16.mxu0 0
        %1575 = vmatpush1.bf16.msra.mxu0 0
        %1576 = vmatprep.mubr.bf16.mxu0 0
        %1577 = vmatmul.mubr.bf16.gmra.mrb[0].mxu0 %v1542
        %v1578 = vpop.f32.mrb[0].mxu0
        %v1579 = vadd.f32 0.0, %v1578
        %v1580 = vpop.f32.mrb[0].mxu0
        %v1581 = vpop.f32.mrb[0].mxu0
        %v1582 = vpop.f32.mrb[0].mxu0
        %1583 = vdwg.mxu0
        %v1592 = vunpack.c.l.b16 %v1434
        %v1593 = vunpack.c.l.b16 %v1435
        %v1594 = vunpack.c.l.b16 %v1436
        %v1595 = vunpack.c.l.b16 %v1437
        %v1596 = vunpack.c.l.b16 %v1438
        %v1597 = vunpack.c.l.b16 %v1439
        %v1598 = vunpack.c.l.b16 %v1440
        %v1599 = vunpack.c.l.b16 %v1441
        %v1600 = vpack.c.b16 %v1593, %v1592
        %v1601 = vpack.c.b16 %v1595, %v1594
        %v1602 = vpack.c.b16 %v1597, %v1596
        %v1603 = vpack.c.b16 %v1599, %v1598
        %v1609 = vsel %vm991, %v1416, 0
        %1611 = vmatprep.subr.bf16.mxu0 0
        %1612 = vmatpush1.bf16.msra.mxu0 %v1600
        %1613 = vmatprep.subr.bf16.mxu0 0
        %1614 = vmatpush1.bf16.msra.mxu0 %v1601
        %1615 = vmatprep.subr.bf16.mxu0 0
        %1616 = vmatpush1.bf16.msra.mxu0 %v1602
        %1617 = vmatprep.subr.bf16.mxu0 0
        %1618 = vmatpush1.bf16.msra.mxu0 %v1603
        %1619 = vmatprep.subr.bf16.mxu0 0
        %1620 = vmatpush1.bf16.msra.mxu0 0
        %1621 = vmatprep.subr.bf16.mxu0 0
        %1622 = vmatpush1.bf16.msra.mxu0 0
        %1623 = vmatprep.subr.bf16.mxu0 0
        %1624 = vmatpush1.bf16.msra.mxu0 0
        %1625 = vmatprep.subr.bf16.mxu0 0
        %1626 = vmatpush1.bf16.msra.mxu0 0
        %1627 = vmatprep.subr.bf16.mxu0 0
        %1628 = vmatpush1.bf16.msra.mxu0 0
        %1629 = vmatprep.subr.bf16.mxu0 0
        %1630 = vmatpush1.bf16.msra.mxu0 0
        %1631 = vmatprep.subr.bf16.mxu0 0
        %1632 = vmatpush1.bf16.msra.mxu0 0
        %1633 = vmatprep.subr.bf16.mxu0 0
        %1634 = vmatpush1.bf16.msra.mxu0 0
        %1635 = vmatprep.subr.bf16.mxu0 0
        %1636 = vmatpush1.bf16.msra.mxu0 0
        %1637 = vmatprep.subr.bf16.mxu0 0
        %1638 = vmatpush1.bf16.msra.mxu0 0
        %1639 = vmatprep.subr.bf16.mxu0 0
        %1640 = vmatpush1.bf16.msra.mxu0 0
        %1641 = vmatprep.subr.bf16.mxu0 0
        %1642 = vmatpush1.bf16.msra.mxu0 0
        %1643 = vmatprep.mubr.bf16.mxu0 0
        %1644 = vmatmul.mubr.bf16.gmra.mrb[0].mxu0 %v1609
        %v1645 = vpop.f32.mrb[0].mxu0
        %v1646 = vadd.f32 0.0, %v1645
        %v1647 = vpop.f32.mrb[0].mxu0
        %v1648 = vpop.f32.mrb[0].mxu0
        %v1649 = vpop.f32.mrb[0].mxu0
        %1650 = vdwg.mxu0
        %v1659 = vunpack.c.l.b16 %v1442
        %v1660 = vunpack.c.l.b16 %v1443
        %v1661 = vunpack.c.l.b16 %v1444
        %v1662 = vunpack.c.l.b16 %v1445
        %v1663 = vunpack.c.l.b16 %v1446
        %v1664 = vunpack.c.l.b16 %v1447
        %v1665 = vunpack.c.l.b16 %v1448
        %v1666 = vunpack.c.l.b16 %v1449
        %v1667 = vpack.c.b16 %v1660, %v1659
        %v1668 = vpack.c.b16 %v1662, %v1661
        %v1669 = vpack.c.b16 %v1664, %v1663
        %v1670 = vpack.c.b16 %v1666, %v1665
        %v1676 = vsel %vm991, %v1417, 0
        %1678 = vmatprep.subr.bf16.mxu0 0
        %1679 = vmatpush1.bf16.msra.mxu0 %v1667
        %1680 = vmatprep.subr.bf16.mxu0 0
        %1681 = vmatpush1.bf16.msra.mxu0 %v1668
        %1682 = vmatprep.subr.bf16.mxu0 0
        %1683 = vmatpush1.bf16.msra.mxu0 %v1669
        %1684 = vmatprep.subr.bf16.mxu0 0
        %1685 = vmatpush1.bf16.msra.mxu0 %v1670
        %1686 = vmatprep.subr.bf16.mxu0 0
        %1687 = vmatpush1.bf16.msra.mxu0 0
        %1688 = vmatprep.subr.bf16.mxu0 0
        %1689 = vmatpush1.bf16.msra.mxu0 0
        %1690 = vmatprep.subr.bf16.mxu0 0
        %1691 = vmatpush1.bf16.msra.mxu0 0
        %1692 = vmatprep.subr.bf16.mxu0 0
        %1693 = vmatpush1.bf16.msra.mxu0 0
        %1694 = vmatprep.subr.bf16.mxu0 0
        %1695 = vmatpush1.bf16.msra.mxu0 0
        %1696 = vmatprep.subr.bf16.mxu0 0
        %1697 = vmatpush1.bf16.msra.mxu0 0
        %1698 = vmatprep.subr.bf16.mxu0 0
        %1699 = vmatpush1.bf16.msra.mxu0 0
        %1700 = vmatprep.subr.bf16.mxu0 0
        %1701 = vmatpush1.bf16.msra.mxu0 0
        %1702 = vmatprep.subr.bf16.mxu0 0
        %1703 = vmatpush1.bf16.msra.mxu0 0
        %1704 = vmatprep.subr.bf16.mxu0 0
        %1705 = vmatpush1.bf16.msra.mxu0 0
        %1706 = vmatprep.subr.bf16.mxu0 0
        %1707 = vmatpush1.bf16.msra.mxu0 0
        %1708 = vmatprep.subr.bf16.mxu0 0
        %1709 = vmatpush1.bf16.msra.mxu0 0
        %1710 = vmatprep.mubr.bf16.mxu0 0
        %1711 = vmatmul.mubr.bf16.gmra.mrb[0].mxu0 %v1676
        %v1712 = vpop.f32.mrb[0].mxu0
        %v1713 = vadd.f32 0.0, %v1712
        %v1714 = vpop.f32.mrb[0].mxu0
        %v1715 = vpop.f32.mrb[0].mxu0
        %v1716 = vpop.f32.mrb[0].mxu0
        %1717 = vdwg.mxu0
        %v1718 = vsel %vm788, %v1512, 0.0
        %v1719 = vsel %vm788, %v1579, 0.0
        %v1720 = vadd.f32 %v1718, %v1719
        %v1721 = vsel %vm788, %v1646, 0.0
        %v1722 = vadd.f32 %v1720, %v1721
        %v1723 = vsel %vm788, %v1713, 0.0
        %v1724 = vadd.f32 %v1722, %v1723
        %v1725 = vld [vmem:[%s6] sm:$0x1]
        %v1727 = vlaneseq
        %v1728 = vshrl.u32 %v1727, 7
        %v1729 = vsub.s32 0, %v1728
        %v1730 = vrot.slane %v1725, %v1729
        %v1732 = vadd.f32 %v1724, %v1730
        %1733 = vst.msk [vmem:[%s304] sm:$0xff] %vm788, %v1732
        %s1734 = sand.u32 %s202, 1
        %s1735 = scalar_lea.sflag [#allocation5], %s1734
        %s1736 = sand.u32 %s202, 1
        %s1737 = smul.addr %s1736, 8
        %s1738 = scalar_lea.vmem [#allocation4], %s1737
        // Predicated region
        $region53: #{tpu_custom_call.1} parent=47 // pred_check
          %p1739 = pneg %p212
        $region54: #{tpu_custom_call.1} parent=47 // pred_check_branch
          %1741 = sbr.rel (%p1739) target = $region56
        $region55: #{tpu_custom_call.1} parent=47 // pred_region
          %s1743 = ssub.s32 128, 128
          %1744 = vsyncadd %s1735, %s1743
          %s1745 = sadd.s32 %s26, %s25
          %s1746 = smul.addr %s1745, 128
          %s1747 = scalar_lea.hbm %s7, %s1746
          %s1749 = sshll.u32 %s1738, 4
          %s1750 = int_to_ptr.vmem [resolvable:$true] %s1749
          %1752 = dma.vmem_to_hbm [thread:$0]  %s1750, 128, %s1747, %s1735
        $region56: #{tpu_custom_call.1} parent=47 // pred_fallthru
          _
      $region48: #{tpu_custom_call.1} parent=5 // pred_fallthru
        _
      %p1753 = scmp.le.s32.totalorder 2, %s16
      // Predicated region
      $region57: #{tpu_custom_call.1} parent=5 // pred_check
        %p1754 = pneg %p1753
      $region58: #{tpu_custom_call.1} parent=5 // pred_check_branch
        %1756 = sbr.rel (%p1754) target = $region60
      $region59: #{tpu_custom_call.1} parent=5 // pred_region
        %s1757 = ssub.s32 %s16, 2
        // Predicated region
        $region61: #{tpu_custom_call.1} parent=59 // pred_check
          %p1758 = pneg %p218
        $region62: #{tpu_custom_call.1} parent=59 // pred_check_branch
          %1760 = sbr.rel (%p1758) target = $region64
        $region63: #{tpu_custom_call.1} parent=59 // pred_region
          %s1761 = sand.u32 %s203, 1
          %s1762 = scalar_lea.sflag [#allocation5], %s1761
          %s1763 = sand.u32 %s203, 1
          %s1764 = smul.addr %s1763, 8
          %s1765 = scalar_lea.vmem [#allocation4], %s1764
          %1766 = dma.done %s1762, 128
        $region64: #{tpu_custom_call.1} parent=59 // pred_fallthru
          _
      $region60: #{tpu_custom_call.1} parent=5 // pred_fallthru
        _
    $region6: #{tpu_custom_call.1} parent=1 // loop_footer
      %s20 = sadd.s32 1, %s16
    $region7: #{tpu_custom_call.1} parent=1 // loop_footer_branch
      %15 = sbr.rel target = $region3
    $region8: #{tpu_custom_call.1} parent=1 // loop_exit
      _
    %1767 = vsyncpa [#allocation5], 1
    %s1768 = scalar_lea.sflag [#allocation5], 1
    %1769 = vsyncpa %s1768, 1

</llo_original>
